<compile_context>
chip_gen: v6e
topology: v6e:2x2x1
jax: 0.10.0
libtpu: 0.0.40
codegen_flags: <defaults>
</compile_context>

<pallas_src>
import functools

import jax
import jax.numpy as jnp
from jax.experimental import pallas as pl
from jax.experimental.pallas import tpu as pltpu


def _conv_dw_kernel(p_ref, w1_ref, b1_ref, pw_ref, b2_ref, o_ref, *,
                    stride, th, wo):
    """One (batch image, output-row tile) grid step.

    p_ref : (s*s, THq, Wq, Cin)  bf16 phase planes of this row tile (+halo)
    w1_ref: (9, Cin)   f32       depthwise weights, BN1 scale pre-folded
    b1_ref: (1, Cin)   f32       BN1 shift
    pw_ref: (Cin, Cout) bf16     pointwise weights (transposed), BN2 scale folded
    b2_ref: (1, Cout)  f32       BN2 shift
    o_ref : (TH*Wo, Cout) f32
    """
    s = stride
    cin = p_ref.shape[-1]

    w1 = w1_ref[...]                                     # (9, Cin), loaded once

    # Depthwise 3x3: 9 shift-and-accumulate taps (VPU), f32 accumulation.
    acc = jnp.zeros((th, wo, cin), jnp.float32)
    for dy in range(3):
        for dx in range(3):
            ph = (dy % s) * s + (dx % s)                 # which phase plane
            r0 = dy // s                                 # row offset in tile
            c0 = dx // s                                 # col offset in tile
            win = p_ref[ph, r0:r0 + th, c0:c0 + wo, :].astype(jnp.float32)
            acc = acc + win * w1[dy * 3 + dx]

    # BN1 (scale already folded into w1) + LeakyReLU(0.01).
    y = acc + b1_ref[...]
    y = jnp.where(y > 0, y, 0.01 * y)

    # Pointwise 1x1: (M, Cin) @ (Cin, Cout) -- native MXU orientation
    # (lhs lanes contract with rhs sublanes); bf16 operands, f32 accumulate.
    y2 = y.reshape(th * wo, cin).astype(pw_ref.dtype)
    z = jax.lax.dot_general(y2, pw_ref[...], (((1,), (0,)), ((), ())),
                            preferred_element_type=jnp.float32)

    # BN2 (scale already folded into pw) + LeakyReLU(0.01).
    z = z + b2_ref[...]
    z = jnp.where(z > 0, z, 0.01 * z)
    o_ref[...] = z.astype(o_ref.dtype)


def conv_dw_pallas(x_nchw, params, *, stride=1, tile_rows=8,
                   act_dtype=jnp.bfloat16, mxu_dtype=jnp.bfloat16):
    """Forward pass of conv_dw. Input/output in NCHW (PyTorch convention)."""
    dw_w, g1, be1, rm1, rv1, pw_w, g2, be2, rm2, rv2 = params
    eps = 1e-5
    f32 = jnp.float32

    n, cin, h, w = x_nchw.shape
    cout = pw_w.shape[0]
    s = stride
    ho = (h + 2 - 3) // s + 1
    wo = (w + 2 - 3) // s + 1
    hh = 2 // s                     # halo extent (2 // s): 2, 1, 0 for s=1,2,3

    # ---- row tiling: grid = (N, NT), both axes independent ("parallel") ----
    th = min(tile_rows, ho)         # output rows per tile
    nt = pl.cdiv(ho, th)
    ho_pad = nt * th                # padded row count (extra rows sliced off)
    thq = th + hh                   # plane rows per tile (incl. halo)
    hq = ho_pad + hh                # total plane rows needed
    wq = wo + hh
    hp, wp = hq * s, wq * s         # padded-image extent consumed

    # ---- fold BN into the conv weights (done once, outside the kernel) ----
    inv1 = (g1 / jnp.sqrt(rv1 + eps)).astype(f32)                     # (Cin,)
    b1 = (be1 - rm1 * inv1).reshape(1, cin).astype(f32)
    inv2 = (g2 / jnp.sqrt(rv2 + eps)).astype(f32)                     # (Cout,)
    b2 = (be2 - rm2 * inv2).reshape(1, cout).astype(f32)
    # depthwise (Cin,1,3,3) -> (9, Cin), BN1 scale folded, f32 (VPU dtype).
    w1 = (jnp.transpose(dw_w[:, 0, :, :], (1, 2, 0)).reshape(9, cin)
          * inv1[None, :]).astype(f32)
    # pointwise (Cout,Cin,1,1) -> (Cin, Cout) pre-transposed, BN2 folded, bf16.
    pwt = (pw_w[:, :, 0, 0] * inv2[:, None]).T.astype(mxu_dtype)

    # ---- NHWC + bf16 activations + pad (pad/crop to the consumed extent) ----
    x = jnp.transpose(x_nchw, (0, 2, 3, 1)).astype(act_dtype)
    xp = jnp.pad(x, ((0, 0), (1, max(hp, h + 2) - h - 1),
                     (1, max(wp, w + 2) - w - 1), (0, 0)))
    xp = xp[:, :hp, :wp, :]

    # ---- space-to-depth phase planes (identity -- skipped -- for stride 1) ----
    if s == 1:
        p = xp[None]                                      # (1, N, Hq, Wq, Cin)
    else:
        p = xp.reshape(n, hq, s, wq, s, cin)
        p = jnp.transpose(p, (2, 4, 0, 1, 3, 5)).reshape(s * s, n, hq, wq, cin)

    # ---- overlapping row tiles (duplicates only `hh` halo rows per tile) ----
    if nt == 1:
        pt = p[:, :, None]                                # (s*s, N, 1, THq, Wq, Cin)
    else:
        idx = jnp.arange(nt)[:, None] * th + jnp.arange(thq)[None, :]
        pt = jnp.take(p, idx, axis=2)                     # (s*s, N, NT, THq, Wq, Cin)

    m_tile = th * wo
    out = pl.pallas_call(
        functools.partial(_conv_dw_kernel, stride=s, th=th, wo=wo),
        out_shape=jax.ShapeDtypeStruct((n, nt, m_tile, cout), f32),
        grid=(n, nt),
        in_specs=[
            pl.BlockSpec((s * s, None, None, thq, wq, cin),
                         lambda ni, ti: (0, ni, ti, 0, 0, 0)),
            pl.BlockSpec((9, cin), lambda ni, ti: (0, 0)),
            pl.BlockSpec((1, cin), lambda ni, ti: (0, 0)),
            pl.BlockSpec((cin, cout), lambda ni, ti: (0, 0)),
            pl.BlockSpec((1, cout), lambda ni, ti: (0, 0)),
        ],
        out_specs=pl.BlockSpec((None, None, m_tile, cout),
                               lambda ni, ti: (ni, ti, 0, 0)),
        compiler_params=pltpu.CompilerParams(
            dimension_semantics=("parallel", "parallel"),
            # explicit scoped-VMEM budget; leaves headroom on v7x (64 MiB phys).
            vmem_limit_bytes=48 * 1024 * 1024),
    )(pt, w1, b1, pwt, b2)

    # (N, NT, TH*Wo, Cout) -> (N, Cout, Ho, Wo); drop padded output rows.
    out = out.reshape(n, nt * th, wo, cout)[:, :ho]
    return jnp.transpose(out, (0, 3, 1, 2))


def _reference(x_nchw, params, *, stride=1):
    """Pure-JAX f32 reference (eval-mode BN), for correctness checking."""
    dw_w, g1, be1, rm1, rv1, pw_w, g2, be2, rm2, rv2 = params
    eps = 1e-5
    dn = ("NCHW", "OIHW", "NCHW")
    cin = x_nchw.shape[1]

    y = jax.lax.conv_general_dilated(x_nchw, dw_w, (stride, stride),
                                     ((1, 1), (1, 1)),
                                     dimension_numbers=dn,
                                     feature_group_count=cin)
    y = (y - rm1[None, :, None, None]) / jnp.sqrt(rv1 + eps)[None, :, None, None]
    y = y * g1[None, :, None, None] + be1[None, :, None, None]
    y = jnp.where(y > 0, y, 0.01 * y)

    z = jax.lax.conv_general_dilated(y, pw_w, (1, 1), ((0, 0), (0, 0)),
                                     dimension_numbers=dn)
    z = (z - rm2[None, :, None, None]) / jnp.sqrt(rv2 + eps)[None, :, None, None]
    z = z * g2[None, :, None, None] + be2[None, :, None, None]
    z = jnp.where(z > 0, z, 0.01 * z)
    return z


if __name__ == "__main__":
    key = jax.random.PRNGKey(0)
    ks = jax.random.split(key, 8)

    N, Cin, Cout, H, W = 2, 8, 16, 16, 16

    x = jax.random.normal(ks[0], (N, Cin, H, W), jnp.float32)

    # Deterministic synthetic parameters (PyTorch layouts).
    dw_w = 0.1 * jax.random.normal(ks[1], (Cin, 1, 3, 3), jnp.float32)
    pw_w = 0.1 * jax.random.normal(ks[2], (Cout, Cin, 1, 1), jnp.float32)
    g1 = 1.0 + 0.1 * jax.random.normal(ks[3], (Cin,), jnp.float32)
    be1 = 0.1 * jax.random.normal(ks[4], (Cin,), jnp.float32)
    rm1 = 0.1 * jax.random.normal(ks[5], (Cin,), jnp.float32)
    rv1 = jax.random.uniform(ks[6], (Cin,), jnp.float32, 0.5, 1.5)
    g2 = jnp.linspace(0.9, 1.1, Cout, dtype=jnp.float32)
    be2 = jnp.linspace(-0.1, 0.1, Cout, dtype=jnp.float32)
    rm2 = jnp.linspace(-0.05, 0.05, Cout, dtype=jnp.float32)
    rv2 = jnp.linspace(0.8, 1.2, Cout, dtype=jnp.float32)

    params = (dw_w, g1, be1, rm1, rv1, pw_w, g2, be2, rm2, rv2)

    # (stride, H, W, tile_rows): exercises the halo'd multi-row-tile path
    # (stride 1, grid (2,2)), the single-tile stride-2 path, and an odd size.
    configs = [(1, 16, 16, 8), (2, 16, 16, 8), (2, 15, 15, 8)]
    for s, hh_, ww_, tr in configs:
        xin = x[:, :, :hh_, :ww_]
        fn = jax.jit(functools.partial(conv_dw_pallas, stride=s, tile_rows=tr))
        out = jax.block_until_ready(fn(xin, params))

        ref = _reference(xin, params, stride=s)
        ho = (hh_ + 2 - 3) // s + 1
        wo = (ww_ + 2 - 3) // s + 1
        assert out.shape == ref.shape == (N, Cout, ho, wo), (out.shape, ref.shape)
        err = float(jnp.max(jnp.abs(out - ref)))
        # bf16 activations + bf16 MXU operands (f32 accumulation) -> tolerance
        # loosened from 1e-4 to 2e-2, per review guidance.
        assert jnp.allclose(out, ref, atol=2e-2, rtol=2e-2), \
            f"stride={s} H={hh_} W={ww_} max abs err {err}"

    print("KERNEL_OK")
</pallas_src>

<mosaic_0001>
module attributes {stable_mosaic.version = 11 : i64} {
  func.func @_conv_dw_kernel(%arg0: i32, %arg1: i32, %arg2: memref<1x1x1x10x18x8xbf16, #tpu.memory_space<vmem>>, %arg3: memref<9x8xf32, #tpu.memory_space<vmem>>, %arg4: memref<1x8xf32, #tpu.memory_space<vmem>>, %arg5: memref<8x16xbf16, #tpu.memory_space<vmem>>, %arg6: memref<1x16xf32, #tpu.memory_space<vmem>>, %arg7: memref<1x1x128x16xf32, #tpu.memory_space<vmem>>) attributes {dimension_semantics = [#tpu.dimension_semantics<parallel>, #tpu.dimension_semantics<parallel>], iteration_bounds = array<i64: 2, 2>, scalar_prefetch = 0 : i64, scratch_operands = 0 : i64, tpu.core_type = #tpu.core_type<tc>, window_params = [{transform_indices = @transform_0, window_bounds = array<i64: 1, 1, 1, 10, 18, 8>}, {pipeline_mode = #tpu.pipeline_mode<synchronous>, transform_indices = @transform_1, window_bounds = array<i64: 9, 8>}, {pipeline_mode = #tpu.pipeline_mode<synchronous>, transform_indices = @transform_2, window_bounds = array<i64: 1, 8>}, {pipeline_mode = #tpu.pipeline_mode<synchronous>, transform_indices = @transform_3, window_bounds = array<i64: 8, 16>}, {pipeline_mode = #tpu.pipeline_mode<synchronous>, transform_indices = @transform_4, window_bounds = array<i64: 1, 16>}, {transform_indices = @transform_5, window_bounds = array<i64: 1, 1, 128, 16>}]} {
    %c0 = arith.constant 0 : index
    %c0_0 = arith.constant 0 : index
    %0 = vector.load %arg3[%c0, %c0_0] : memref<9x8xf32, #tpu.memory_space<vmem>>, vector<9x8xf32>
    %cst = arith.constant 0.000000e+00 : f32
    %1 = vector.broadcast %cst : f32 to vector<8x16x8xf32>
    %c0_1 = arith.constant 0 : index
    %c0_2 = arith.constant 0 : index
    %c0_3 = arith.constant 0 : index
    %c0_4 = arith.constant 0 : index
    %c0_5 = arith.constant 0 : index
    %c0_6 = arith.constant 0 : index
    %2 = vector.load %arg2[%c0_1, %c0_2, %c0_3, %c0_4, %c0_5, %c0_6] : memref<1x1x1x10x18x8xbf16, #tpu.memory_space<vmem>>, vector<1x1x1x8x16x8xbf16>
    %3 = vector.shape_cast %2 : vector<1x1x1x8x16x8xbf16> to vector<8x16x8xbf16>
    %4 = arith.extf %3 : vector<8x16x8xbf16> to vector<8x16x8xf32>
    %5 = vector.extract_strided_slice %0 {offsets = [0, 0], sizes = [1, 8], strides = [1, 1]} : vector<9x8xf32> to vector<1x8xf32>
    %6 = vector.shape_cast %5 : vector<1x8xf32> to vector<8xf32>
    %7 = vector.shape_cast %6 : vector<8xf32> to vector<1x1x8xf32>
    %8 = vector.broadcast %7 : vector<1x1x8xf32> to vector<8x16x8xf32>
    %9 = arith.mulf %4, %8 : vector<8x16x8xf32>
    %10 = arith.addf %1, %9 : vector<8x16x8xf32>
    %c0_7 = arith.constant 0 : index
    %c0_8 = arith.constant 0 : index
    %c0_9 = arith.constant 0 : index
    %c0_10 = arith.constant 0 : index
    %c1 = arith.constant 1 : index
    %c0_11 = arith.constant 0 : index
    %11 = vector.load %arg2[%c0_7, %c0_8, %c0_9, %c0_10, %c1, %c0_11] : memref<1x1x1x10x18x8xbf16, #tpu.memory_space<vmem>>, vector<1x1x1x8x16x8xbf16>
    %12 = vector.shape_cast %11 : vector<1x1x1x8x16x8xbf16> to vector<8x16x8xbf16>
    %13 = arith.extf %12 : vector<8x16x8xbf16> to vector<8x16x8xf32>
    %14 = vector.extract_strided_slice %0 {offsets = [1, 0], sizes = [1, 8], strides = [1, 1]} : vector<9x8xf32> to vector<1x8xf32>
    %15 = vector.shape_cast %14 : vector<1x8xf32> to vector<8xf32>
    %16 = vector.shape_cast %15 : vector<8xf32> to vector<1x1x8xf32>
    %17 = vector.broadcast %16 : vector<1x1x8xf32> to vector<8x16x8xf32>
    %18 = arith.mulf %13, %17 : vector<8x16x8xf32>
    %19 = arith.addf %10, %18 : vector<8x16x8xf32>
    %c0_12 = arith.constant 0 : index
    %c0_13 = arith.constant 0 : index
    %c0_14 = arith.constant 0 : index
    %c0_15 = arith.constant 0 : index
    %c2 = arith.constant 2 : index
    %c0_16 = arith.constant 0 : index
    %20 = vector.load %arg2[%c0_12, %c0_13, %c0_14, %c0_15, %c2, %c0_16] : memref<1x1x1x10x18x8xbf16, #tpu.memory_space<vmem>>, vector<1x1x1x8x16x8xbf16>
    %21 = vector.shape_cast %20 : vector<1x1x1x8x16x8xbf16> to vector<8x16x8xbf16>
    %22 = arith.extf %21 : vector<8x16x8xbf16> to vector<8x16x8xf32>
    %23 = vector.extract_strided_slice %0 {offsets = [2, 0], sizes = [1, 8], strides = [1, 1]} : vector<9x8xf32> to vector<1x8xf32>
    %24 = vector.shape_cast %23 : vector<1x8xf32> to vector<8xf32>
    %25 = vector.shape_cast %24 : vector<8xf32> to vector<1x1x8xf32>
    %26 = vector.broadcast %25 : vector<1x1x8xf32> to vector<8x16x8xf32>
    %27 = arith.mulf %22, %26 : vector<8x16x8xf32>
    %28 = arith.addf %19, %27 : vector<8x16x8xf32>
    %c0_17 = arith.constant 0 : index
    %c0_18 = arith.constant 0 : index
    %c0_19 = arith.constant 0 : index
    %c1_20 = arith.constant 1 : index
    %c0_21 = arith.constant 0 : index
    %c0_22 = arith.constant 0 : index
    %29 = vector.load %arg2[%c0_17, %c0_18, %c0_19, %c1_20, %c0_21, %c0_22] : memref<1x1x1x10x18x8xbf16, #tpu.memory_space<vmem>>, vector<1x1x1x8x16x8xbf16>
    %30 = vector.shape_cast %29 : vector<1x1x1x8x16x8xbf16> to vector<8x16x8xbf16>
    %31 = arith.extf %30 : vector<8x16x8xbf16> to vector<8x16x8xf32>
    %32 = vector.extract_strided_slice %0 {offsets = [3, 0], sizes = [1, 8], strides = [1, 1]} : vector<9x8xf32> to vector<1x8xf32>
    %33 = vector.shape_cast %32 : vector<1x8xf32> to vector<8xf32>
    %34 = vector.shape_cast %33 : vector<8xf32> to vector<1x1x8xf32>
    %35 = vector.broadcast %34 : vector<1x1x8xf32> to vector<8x16x8xf32>
    %36 = arith.mulf %31, %35 : vector<8x16x8xf32>
    %37 = arith.addf %28, %36 : vector<8x16x8xf32>
    %c0_23 = arith.constant 0 : index
    %c0_24 = arith.constant 0 : index
    %c0_25 = arith.constant 0 : index
    %c1_26 = arith.constant 1 : index
    %c1_27 = arith.constant 1 : index
    %c0_28 = arith.constant 0 : index
    %38 = vector.load %arg2[%c0_23, %c0_24, %c0_25, %c1_26, %c1_27, %c0_28] : memref<1x1x1x10x18x8xbf16, #tpu.memory_space<vmem>>, vector<1x1x1x8x16x8xbf16>
    %39 = vector.shape_cast %38 : vector<1x1x1x8x16x8xbf16> to vector<8x16x8xbf16>
    %40 = arith.extf %39 : vector<8x16x8xbf16> to vector<8x16x8xf32>
    %41 = vector.extract_strided_slice %0 {offsets = [4, 0], sizes = [1, 8], strides = [1, 1]} : vector<9x8xf32> to vector<1x8xf32>
    %42 = vector.shape_cast %41 : vector<1x8xf32> to vector<8xf32>
    %43 = vector.shape_cast %42 : vector<8xf32> to vector<1x1x8xf32>
    %44 = vector.broadcast %43 : vector<1x1x8xf32> to vector<8x16x8xf32>
    %45 = arith.mulf %40, %44 : vector<8x16x8xf32>
    %46 = arith.addf %37, %45 : vector<8x16x8xf32>
    %c0_29 = arith.constant 0 : index
    %c0_30 = arith.constant 0 : index
    %c0_31 = arith.constant 0 : index
    %c1_32 = arith.constant 1 : index
    %c2_33 = arith.constant 2 : index
    %c0_34 = arith.constant 0 : index
    %47 = vector.load %arg2[%c0_29, %c0_30, %c0_31, %c1_32, %c2_33, %c0_34] : memref<1x1x1x10x18x8xbf16, #tpu.memory_space<vmem>>, vector<1x1x1x8x16x8xbf16>
    %48 = vector.shape_cast %47 : vector<1x1x1x8x16x8xbf16> to vector<8x16x8xbf16>
    %49 = arith.extf %48 : vector<8x16x8xbf16> to vector<8x16x8xf32>
    %50 = vector.extract_strided_slice %0 {offsets = [5, 0], sizes = [1, 8], strides = [1, 1]} : vector<9x8xf32> to vector<1x8xf32>
    %51 = vector.shape_cast %50 : vector<1x8xf32> to vector<8xf32>
    %52 = vector.shape_cast %51 : vector<8xf32> to vector<1x1x8xf32>
    %53 = vector.broadcast %52 : vector<1x1x8xf32> to vector<8x16x8xf32>
    %54 = arith.mulf %49, %53 : vector<8x16x8xf32>
    %55 = arith.addf %46, %54 : vector<8x16x8xf32>
    %c0_35 = arith.constant 0 : index
    %c0_36 = arith.constant 0 : index
    %c0_37 = arith.constant 0 : index
    %c2_38 = arith.constant 2 : index
    %c0_39 = arith.constant 0 : index
    %c0_40 = arith.constant 0 : index
    %56 = vector.load %arg2[%c0_35, %c0_36, %c0_37, %c2_38, %c0_39, %c0_40] : memref<1x1x1x10x18x8xbf16, #tpu.memory_space<vmem>>, vector<1x1x1x8x16x8xbf16>
    %57 = vector.shape_cast %56 : vector<1x1x1x8x16x8xbf16> to vector<8x16x8xbf16>
    %58 = arith.extf %57 : vector<8x16x8xbf16> to vector<8x16x8xf32>
    %59 = vector.extract_strided_slice %0 {offsets = [6, 0], sizes = [1, 8], strides = [1, 1]} : vector<9x8xf32> to vector<1x8xf32>
    %60 = vector.shape_cast %59 : vector<1x8xf32> to vector<8xf32>
    %61 = vector.shape_cast %60 : vector<8xf32> to vector<1x1x8xf32>
    %62 = vector.broadcast %61 : vector<1x1x8xf32> to vector<8x16x8xf32>
    %63 = arith.mulf %58, %62 : vector<8x16x8xf32>
    %64 = arith.addf %55, %63 : vector<8x16x8xf32>
    %c0_41 = arith.constant 0 : index
    %c0_42 = arith.constant 0 : index
    %c0_43 = arith.constant 0 : index
    %c2_44 = arith.constant 2 : index
    %c1_45 = arith.constant 1 : index
    %c0_46 = arith.constant 0 : index
    %65 = vector.load %arg2[%c0_41, %c0_42, %c0_43, %c2_44, %c1_45, %c0_46] : memref<1x1x1x10x18x8xbf16, #tpu.memory_space<vmem>>, vector<1x1x1x8x16x8xbf16>
    %66 = vector.shape_cast %65 : vector<1x1x1x8x16x8xbf16> to vector<8x16x8xbf16>
    %67 = arith.extf %66 : vector<8x16x8xbf16> to vector<8x16x8xf32>
    %68 = vector.extract_strided_slice %0 {offsets = [7, 0], sizes = [1, 8], strides = [1, 1]} : vector<9x8xf32> to vector<1x8xf32>
    %69 = vector.shape_cast %68 : vector<1x8xf32> to vector<8xf32>
    %70 = vector.shape_cast %69 : vector<8xf32> to vector<1x1x8xf32>
    %71 = vector.broadcast %70 : vector<1x1x8xf32> to vector<8x16x8xf32>
    %72 = arith.mulf %67, %71 : vector<8x16x8xf32>
    %73 = arith.addf %64, %72 : vector<8x16x8xf32>
    %c0_47 = arith.constant 0 : index
    %c0_48 = arith.constant 0 : index
    %c0_49 = arith.constant 0 : index
    %c2_50 = arith.constant 2 : index
    %c2_51 = arith.constant 2 : index
    %c0_52 = arith.constant 0 : index
    %74 = vector.load %arg2[%c0_47, %c0_48, %c0_49, %c2_50, %c2_51, %c0_52] : memref<1x1x1x10x18x8xbf16, #tpu.memory_space<vmem>>, vector<1x1x1x8x16x8xbf16>
    %75 = vector.shape_cast %74 : vector<1x1x1x8x16x8xbf16> to vector<8x16x8xbf16>
    %76 = arith.extf %75 : vector<8x16x8xbf16> to vector<8x16x8xf32>
    %77 = vector.extract_strided_slice %0 {offsets = [8, 0], sizes = [1, 8], strides = [1, 1]} : vector<9x8xf32> to vector<1x8xf32>
    %78 = vector.shape_cast %77 : vector<1x8xf32> to vector<8xf32>
    %79 = vector.shape_cast %78 : vector<8xf32> to vector<1x1x8xf32>
    %80 = vector.broadcast %79 : vector<1x1x8xf32> to vector<8x16x8xf32>
    %81 = arith.mulf %76, %80 : vector<8x16x8xf32>
    %82 = arith.addf %73, %81 : vector<8x16x8xf32>
    %c0_53 = arith.constant 0 : index
    %c0_54 = arith.constant 0 : index
    %83 = vector.load %arg4[%c0_53, %c0_54] : memref<1x8xf32, #tpu.memory_space<vmem>>, vector<1x8xf32>
    %84 = vector.shape_cast %83 : vector<1x8xf32> to vector<1x1x8xf32>
    %85 = vector.broadcast %84 : vector<1x1x8xf32> to vector<8x16x8xf32>
    %86 = arith.addf %82, %85 : vector<8x16x8xf32>
    %cst_55 = arith.constant 0.000000e+00 : f32
    %87 = vector.broadcast %cst_55 : f32 to vector<8x16x8xf32>
    %88 = arith.cmpf ogt, %86, %87 : vector<8x16x8xf32>
    %cst_56 = arith.constant 0.00999999977 : f32
    %89 = vector.broadcast %cst_56 : f32 to vector<8x16x8xf32>
    %90 = arith.mulf %89, %86 : vector<8x16x8xf32>
    %91 = arith.select %88, %86, %90 : vector<8x16x8xi1>, vector<8x16x8xf32>
    %92 = vector.shape_cast %91 : vector<8x16x8xf32> to vector<128x8xf32>
    %93 = arith.truncf %92 : vector<128x8xf32> to vector<128x8xbf16>
    %c0_57 = arith.constant 0 : index
    %c0_58 = arith.constant 0 : index
    %94 = vector.load %arg5[%c0_57, %c0_58] : memref<8x16xbf16, #tpu.memory_space<vmem>>, vector<8x16xbf16>
    %cst_59 = arith.constant dense<0.000000e+00> : vector<128x16xf32>
    %95 = tpu.matmul %93, %94, %cst_59 {dimension_numbers = #tpu.dot_dimension_numbers<[1], [0], [0], [1], [0, 0, 1, 1], [], []>} : vector<128x8xbf16>, vector<8x16xbf16>, vector<128x16xf32> -> vector<128x16xf32>
    %c0_60 = arith.constant 0 : index
    %c0_61 = arith.constant 0 : index
    %96 = vector.load %arg6[%c0_60, %c0_61] : memref<1x16xf32, #tpu.memory_space<vmem>>, vector<1x16xf32>
    %97 = vector.broadcast %96 : vector<1x16xf32> to vector<128x16xf32>
    %98 = arith.addf %95, %97 : vector<128x16xf32>
    %cst_62 = arith.constant 0.000000e+00 : f32
    %99 = vector.broadcast %cst_62 : f32 to vector<128x16xf32>
    %100 = arith.cmpf ogt, %98, %99 : vector<128x16xf32>
    %cst_63 = arith.constant 0.00999999977 : f32
    %101 = vector.broadcast %cst_63 : f32 to vector<128x16xf32>
    %102 = arith.mulf %101, %98 : vector<128x16xf32>
    %103 = arith.select %100, %98, %102 : vector<128x16xi1>, vector<128x16xf32>
    %c0_64 = arith.constant 0 : index
    %c0_65 = arith.constant 0 : index
    %c0_66 = arith.constant 0 : index
    %c0_67 = arith.constant 0 : index
    %104 = vector.load %arg7[%c0_64, %c0_65, %c0_66, %c0_67] : memref<1x1x128x16xf32, #tpu.memory_space<vmem>>, vector<1x1x128x16xf32>
    %105 = vector.shape_cast %104 : vector<1x1x128x16xf32> to vector<128x16xf32>
    %106 = vector.shape_cast %103 : vector<128x16xf32> to vector<1x1x128x16xf32>
    tpu.vector_store %arg7[%c0_64, %c0_65, %c0_66, %c0_67], %106 {strides = array<i32>} : memref<1x1x128x16xf32, #tpu.memory_space<vmem>>, vector<1x1x128x16xf32>,
    return
  }
  func.func @transform_0(%arg0: i32, %arg1: i32) -> (i32, i32, i32, i32, i32, i32) {
    %c0_i32 = arith.constant 0 : i32
    %c0_i32_0 = arith.constant 0 : i32
    %c0_i32_1 = arith.constant 0 : i32
    %c0_i32_2 = arith.constant 0 : i32
    %c0_i32_3 = arith.constant 0 : i32
    return %c0_i32, %arg0, %arg1, %c0_i32_0, %c0_i32_1, %c0_i32_2 : i32, i32, i32, i32, i32, i32
  }
  func.func @transform_1(%arg0: i32, %arg1: i32) -> (i32, i32) {
    %c0_i32 = arith.constant 0 : i32
    %c0_i32_0 = arith.constant 0 : i32
    %c0_i32_1 = arith.constant 0 : i32
    return %c0_i32, %c0_i32_0 : i32, i32
  }
  func.func @transform_2(%arg0: i32, %arg1: i32) -> (i32, i32) {
    %c0_i32 = arith.constant 0 : i32
    %c0_i32_0 = arith.constant 0 : i32
    %c0_i32_1 = arith.constant 0 : i32
    return %c0_i32, %c0_i32_0 : i32, i32
  }
  func.func @transform_3(%arg0: i32, %arg1: i32) -> (i32, i32) {
    %c0_i32 = arith.constant 0 : i32
    %c0_i32_0 = arith.constant 0 : i32
    %c0_i32_1 = arith.constant 0 : i32
    return %c0_i32, %c0_i32_0 : i32, i32
  }
  func.func @transform_4(%arg0: i32, %arg1: i32) -> (i32, i32) {
    %c0_i32 = arith.constant 0 : i32
    %c0_i32_0 = arith.constant 0 : i32
    %c0_i32_1 = arith.constant 0 : i32
    return %c0_i32, %c0_i32_0 : i32, i32
  }
  func.func @transform_5(%arg0: i32, %arg1: i32) -> (i32, i32, i32, i32) {
    %c0_i32 = arith.constant 0 : i32
    %c0_i32_0 = arith.constant 0 : i32
    %c0_i32_1 = arith.constant 0 : i32
    return %arg0, %arg1, %c0_i32, %c0_i32_0 : i32, i32, i32, i32
  }
}

</mosaic_0001>

<llo_original>
// kernel: conv_dw_pallas.1
$region0: #{conv_dw_pallas.1}
  #allocation0 [shape = 'u32[]', space=smem, size = 0x4, offset = 0x4, fixed_abs, tag = 'smem constant byte address 0x4 - core index']
  #allocation1 [shape = 'u32[144,128]{1,0:T(1,128)}', space=vmem, size = 0x12000, scoped, tag = 'internal scratch']
  %s0 = inlined_call_operand.vmem [shape: bf16[1,2,2,10,18,8], index: 0, kind: input, shape index: {}]
  %s1 = inlined_call_operand.vmem [shape: f32[9,8], index: 1, kind: input, shape index: {}]
  %s2 = inlined_call_operand.vmem [shape: f32[1,8], index: 2, kind: input, shape index: {}]
  %s3 = inlined_call_operand.vmem [shape: bf16[8,16], index: 3, kind: input, shape index: {}]
  %s4 = inlined_call_operand.vmem [shape: f32[1,16], index: 4, kind: input, shape index: {}]
  %s5 = inlined_call_operand.vmem [shape: f32[2,2,128,16], index: 5, kind: output, shape index: {}]
  %s6 = sld [smem:[#allocation0]]
  $region53: #{conv_dw_pallas.1} parent=0
    _
  %s8 = ssub.s32 1, %s6
  %s9 = scalar_select 0, %s8, %s6
  loop: start=0, step=1, limit=6
  $region2: #{conv_dw_pallas.1} parent=0 // loop_pre_header
    _
  $region3: #{conv_dw_pallas.1} parent=0 // loop_header
    %s11 = sphi 0, %s15
    %p12 = scmp.ge.s32.totalorder %s11, 6
    %s18 = sphi 0, %s30
    %s19 = sphi 0, %s26
    %s20 = sphi 0, %s18
    %s21 = sphi 0, %s19
    %s22 = sphi 0, %s20
    %s23 = sphi 0, %s21
    %s35 = sphi 0, %s37
    %s38 = sphi 0, %s35
    %s39 = sphi 0, %s38
    %s55 = sphi 0, %s39
    %s59 = sphi 0, %s59
    %s61 = sphi 0, %s59
    %s62 = sphi 0, %s61
    %s76 = sphi 0, %s62
    %s80 = sphi 0, %s80
    %s82 = sphi 0, %s80
    %s83 = sphi 0, %s82
    %s97 = sphi 0, %s83
    %s101 = sphi 0, %s101
    %s103 = sphi 0, %s101
    %s104 = sphi 0, %s103
    %s118 = sphi 0, %s104
    %s122 = sphi 0, %s122
    %s124 = sphi 0, %s122
    %s125 = sphi 0, %s124
    %s139 = sphi 0, %s125
    %s147 = sphi 0, %s149
    %s150 = sphi 0, %s147
    %s151 = sphi 0, %s150
    %s167 = sphi 0, %s151
  $region4: #{conv_dw_pallas.1} parent=0 // loop_header_branch
    %14 = sbr.rel (%p12) target = $region8
  $region5: #{conv_dw_pallas.1} parent=0 // loop_body
    %s16 = ssub.s32 %s11, 1
    %s17 = ssub.s32 %s11, 2
    %s24 = sadd.s32 1, %s19
    %p25 = scmp.ge.s32.totalorder %s24, 2
    %s26 = scalar_select %p25, 0, %s24
    %s27 = sadd.s32 1, %s18
    %s28 = scalar_select %p25, %s27, %s18
    %p29 = scmp.ge.s32.totalorder %s28, 2
    %s30 = scalar_select %p29, 0, %s28
    %s31 = ssub.s32 %s18, %s30
    %s32 = ssub.s32 %s19, %s26
    %s33 = sor.u32 %s31, %s32
    %p34 = scmp.eq.s32.totalorder %s33, 0
    %s36 = sadd.s32 %s35, 1
    %s37 = scalar_select %p34, %s35, %s36
    %p40 = pneg %p34
    %p41 = scmp.eq.s32.totalorder %s11, 3
    %p42 = por %p40, %p41
    %p43 = scmp.ne.s32.totalorder %s35, %s38
    %p44 = scmp.eq.s32.totalorder %s11, 0
    %p45 = por %p43, %p44
    %p46 = scmp.ne.s32.totalorder %s35, %s38
    %p47 = scmp.eq.s32.totalorder %s16, 3
    %p48 = por %p46, %p47
    %p49 = scmp.ne.s32.totalorder %s38, %s39
    %p50 = scmp.eq.s32.totalorder %s16, 0
    %p51 = por %p49, %p50
    %p52 = scmp.ne.s32.totalorder %s38, %s39
    %p53 = scmp.eq.s32.totalorder %s17, 3
    %p54 = por %p52, %p53
    %p56 = scmp.ne.s32.totalorder %s39, %s55
    %p57 = scmp.eq.s32.totalorder %s17, 0
    %p58 = por %p56, %p57
    %s60 = sadd.s32 %s59, 1
    %p63 = scmp.eq.s32.totalorder %s11, 3
    %p64 = scmp.ne.s32.totalorder %s59, %s61
    %p65 = scmp.eq.s32.totalorder %s11, 0
    %p66 = por %p64, %p65
    %p67 = scmp.ne.s32.totalorder %s59, %s61
    %p68 = scmp.eq.s32.totalorder %s16, 3
    %p69 = por %p67, %p68
    %p70 = scmp.ne.s32.totalorder %s61, %s62
    %p71 = scmp.eq.s32.totalorder %s16, 0
    %p72 = por %p70, %p71
    %p73 = scmp.ne.s32.totalorder %s61, %s62
    %p74 = scmp.eq.s32.totalorder %s17, 3
    %p75 = por %p73, %p74
    %p77 = scmp.ne.s32.totalorder %s62, %s76
    %p78 = scmp.eq.s32.totalorder %s17, 0
    %p79 = por %p77, %p78
    %s81 = sadd.s32 %s80, 1
    %p84 = scmp.eq.s32.totalorder %s11, 3
    %p85 = scmp.ne.s32.totalorder %s80, %s82
    %p86 = scmp.eq.s32.totalorder %s11, 0
    %p87 = por %p85, %p86
    %p88 = scmp.ne.s32.totalorder %s80, %s82
    %p89 = scmp.eq.s32.totalorder %s16, 3
    %p90 = por %p88, %p89
    %p91 = scmp.ne.s32.totalorder %s82, %s83
    %p92 = scmp.eq.s32.totalorder %s16, 0
    %p93 = por %p91, %p92
    %p94 = scmp.ne.s32.totalorder %s82, %s83
    %p95 = scmp.eq.s32.totalorder %s17, 3
    %p96 = por %p94, %p95
    %p98 = scmp.ne.s32.totalorder %s83, %s97
    %p99 = scmp.eq.s32.totalorder %s17, 0
    %p100 = por %p98, %p99
    %s102 = sadd.s32 %s101, 1
    %p105 = scmp.eq.s32.totalorder %s11, 3
    %p106 = scmp.ne.s32.totalorder %s101, %s103
    %p107 = scmp.eq.s32.totalorder %s11, 0
    %p108 = por %p106, %p107
    %p109 = scmp.ne.s32.totalorder %s101, %s103
    %p110 = scmp.eq.s32.totalorder %s16, 3
    %p111 = por %p109, %p110
    %p112 = scmp.ne.s32.totalorder %s103, %s104
    %p113 = scmp.eq.s32.totalorder %s16, 0
    %p114 = por %p112, %p113
    %p115 = scmp.ne.s32.totalorder %s103, %s104
    %p116 = scmp.eq.s32.totalorder %s17, 3
    %p117 = por %p115, %p116
    %p119 = scmp.ne.s32.totalorder %s104, %s118
    %p120 = scmp.eq.s32.totalorder %s17, 0
    %p121 = por %p119, %p120
    %s123 = sadd.s32 %s122, 1
    %p126 = scmp.eq.s32.totalorder %s11, 3
    %p127 = scmp.ne.s32.totalorder %s122, %s124
    %p128 = scmp.eq.s32.totalorder %s11, 0
    %p129 = por %p127, %p128
    %p130 = scmp.ne.s32.totalorder %s122, %s124
    %p131 = scmp.eq.s32.totalorder %s16, 3
    %p132 = por %p130, %p131
    %p133 = scmp.ne.s32.totalorder %s124, %s125
    %p134 = scmp.eq.s32.totalorder %s16, 0
    %p135 = por %p133, %p134
    %p136 = scmp.ne.s32.totalorder %s124, %s125
    %p137 = scmp.eq.s32.totalorder %s17, 3
    %p138 = por %p136, %p137
    %p140 = scmp.ne.s32.totalorder %s125, %s139
    %p141 = scmp.eq.s32.totalorder %s17, 0
    %p142 = por %p140, %p141
    %s143 = ssub.s32 %s18, %s30
    %s144 = ssub.s32 %s19, %s26
    %s145 = sor.u32 %s143, %s144
    %p146 = scmp.eq.s32.totalorder %s145, 0
    %s148 = sadd.s32 %s147, 1
    %s149 = scalar_select %p146, %s147, %s148
    %p152 = pneg %p146
    %p153 = scmp.eq.s32.totalorder %s11, 3
    %p154 = por %p152, %p153
    %p155 = scmp.ne.s32.totalorder %s147, %s150
    %p156 = scmp.eq.s32.totalorder %s11, 0
    %p157 = por %p155, %p156
    %p158 = scmp.ne.s32.totalorder %s147, %s150
    %p159 = scmp.eq.s32.totalorder %s16, 3
    %p160 = por %p158, %p159
    %p161 = scmp.ne.s32.totalorder %s150, %s151
    %p162 = scmp.eq.s32.totalorder %s16, 0
    %p163 = por %p161, %p162
    %p164 = scmp.ne.s32.totalorder %s150, %s151
    %p165 = scmp.eq.s32.totalorder %s17, 3
    %p166 = por %p164, %p165
    %p168 = scmp.ne.s32.totalorder %s151, %s167
    %p169 = scmp.eq.s32.totalorder %s17, 0
    %p170 = por %p168, %p169
    %p171 = scmp.le.s32.totalorder 1, %s11
    %p172 = scmp.lt.s32.totalorder %s11, 5
    %p173 = pnand %p171, %p172
    %p174 = pneg %p173
    // Predicated region
    $region9: #{conv_dw_pallas.1} parent=5 // pred_check
      _
    $region10: #{conv_dw_pallas.1} parent=5 // pred_check_branch
      %176 = sbr.rel (%p173) target = $region12
    $region11: #{conv_dw_pallas.1} parent=5 // pred_region
      %s177 = ssub.s32 %s11, 1
      // Predicated region
      $region13: #{conv_dw_pallas.1} parent=11 // pred_check
        %p178 = pneg %p72
      $region14: #{conv_dw_pallas.1} parent=11 // pred_check_branch
        %180 = sbr.rel (%p178) target = $region16
      $region15: #{conv_dw_pallas.1} parent=11 // pred_region
        _
      $region16: #{conv_dw_pallas.1} parent=11 // pred_fallthru
        _
      // Predicated region
      $region17: #{conv_dw_pallas.1} parent=11 // pred_check
        %p181 = pneg %p93
      $region18: #{conv_dw_pallas.1} parent=11 // pred_check_branch
        %183 = sbr.rel (%p181) target = $region20
      $region19: #{conv_dw_pallas.1} parent=11 // pred_region
        _
      $region20: #{conv_dw_pallas.1} parent=11 // pred_fallthru
        _
      // Predicated region
      $region21: #{conv_dw_pallas.1} parent=11 // pred_check
        %p184 = pneg %p114
      $region22: #{conv_dw_pallas.1} parent=11 // pred_check_branch
        %186 = sbr.rel (%p184) target = $region24
      $region23: #{conv_dw_pallas.1} parent=11 // pred_region
        _
      $region24: #{conv_dw_pallas.1} parent=11 // pred_fallthru
        _
      // Predicated region
      $region25: #{conv_dw_pallas.1} parent=11 // pred_check
        %p187 = pneg %p135
      $region26: #{conv_dw_pallas.1} parent=11 // pred_check_branch
        %189 = sbr.rel (%p187) target = $region28
      $region27: #{conv_dw_pallas.1} parent=11 // pred_region
        _
      $region28: #{conv_dw_pallas.1} parent=11 // pred_fallthru
        _
    $region12: #{conv_dw_pallas.1} parent=5 // pred_fallthru
      _
    %p190 = scmp.lt.s32.totalorder %s11, 4
    // Predicated region
    $region29: #{conv_dw_pallas.1} parent=5 // pred_check
      %p191 = pneg %p190
    $region30: #{conv_dw_pallas.1} parent=5 // pred_check_branch
      %193 = sbr.rel (%p191) target = $region32
    $region31: #{conv_dw_pallas.1} parent=5 // pred_region
      // Predicated region
      $region33: #{conv_dw_pallas.1} parent=31 // pred_check
        %p194 = pneg %p45
      $region34: #{conv_dw_pallas.1} parent=31 // pred_check_branch
        %196 = sbr.rel (%p194) target = $region36
      $region35: #{conv_dw_pallas.1} parent=31 // pred_region
        %p197 = scmp.lt.s32.totalorder %s18, 1
        %s198 = scalar_select %p197, %s18, 1
        %p199 = scmp.lt.s32.totalorder %s19, 1
        %s200 = scalar_select %p199, %s19, 1
        %s201 = smul.addr %s200, 30
        %s202 = smul.addr %s198, 60
        %s203 = sadd.s32 %s201, %s202
        %s204 = smul.addr %s203, 4
        %s205 = scalar_lea.vmem %s0, %s204
      $region36: #{conv_dw_pallas.1} parent=31 // pred_fallthru
        _
    $region32: #{conv_dw_pallas.1} parent=5 // pred_fallthru
      _
    %p206 = scmp.le.s32.totalorder 1, %s11
    %p207 = scmp.lt.s32.totalorder %s11, 5
    %p208 = pnand %p206, %p207
    %p209 = pneg %p208
    // Predicated region
    $region37: #{conv_dw_pallas.1} parent=5 // pred_check
      _
    $region38: #{conv_dw_pallas.1} parent=5 // pred_check_branch
      %211 = sbr.rel (%p208) target = $region40
    $region39: #{conv_dw_pallas.1} parent=5 // pred_region
      %s212 = ssub.s32 %s11, 1
      %p213 = scmp.lt.s32.totalorder %s20, 1
      %s214 = scalar_select %p213, %s20, 1
      %p215 = scmp.lt.s32.totalorder %s21, 1
      %s216 = scalar_select %p215, %s21, 1
      %s217 = smul.addr %s216, 30
      %s218 = smul.addr %s214, 60
      %s219 = sadd.s32 %s217, %s218
      %s220 = smul.addr %s219, 4
      %s221 = scalar_lea.vmem %s0, %s220
      %p222 = pneg %p51
      %p223 = pneg %p48
      %p224 = pneg %p72
      %p225 = pneg %p69
      %p226 = pneg %p93
      %p227 = pneg %p90
      %p228 = pneg %p114
      %p229 = pneg %p111
      %p230 = pneg %p135
      %p231 = pneg %p132
      %p232 = pneg %p163
      %p233 = pneg %p160
      %p234 = scmp.lt.s32.totalorder %s20, 1
      %s235 = scalar_select %p234, %s20, 1
      %p236 = scmp.lt.s32.totalorder %s21, 1
      %s237 = scalar_select %p236, %s21, 1
      %s238 = smul.addr %s237, 16
      %s239 = smul.addr %s235, 32
      %s240 = sadd.s32 %s238, %s239
      %s241 = smul.addr %s240, 8
      %s242 = scalar_lea.vmem %s5, %s241
      %p243 = scmp.lt.s32.totalorder %s20, 1
      %s244 = scalar_select %p243, %s20, 1
      %p245 = scmp.lt.s32.totalorder %s21, 1
      %s246 = scalar_select %p245, %s21, 1
      %s247 = smul.addr %s246, 30
      %s248 = smul.addr %s244, 60
      %s249 = sadd.s32 %s247, %s248
      %s250 = smul.addr %s249, 4
      %s251 = scalar_lea.vmem %s0, %s250
      %p252 = scmp.lt.s32.totalorder %s20, 1
      %s253 = scalar_select %p252, %s20, 1
      %p254 = scmp.lt.s32.totalorder %s21, 1
      %s255 = scalar_select %p254, %s21, 1
      %s256 = smul.addr %s255, 16
      %s257 = smul.addr %s253, 32
      %s258 = sadd.s32 %s256, %s257
      %s259 = smul.addr %s258, 8
      %s260 = scalar_lea.vmem %s5, %s259
      %v262 = vld [vmem:[%s1] sm:$0xff]
      %v263 = vld [vmem:[%s1 + $0x8] sm:$0x1]
      %v264 = vld [vmem:[%s251] sm:$0xf]
      %v265 = vld [vmem:[%s251 + $0x4] sm:$0xf]
      %v266 = vld [vmem:[%s251 + $0xc] sm:$0xf]
      %v267 = vld [vmem:[%s251 + $0x10] sm:$0xf]
      %v268 = vld [vmem:[%s251 + $0x18] sm:$0xf]
      %v269 = vld [vmem:[%s251 + $0x1c] sm:$0xf]
      %v270 = vld [vmem:[%s251 + $0x24] sm:$0xf]
      %v271 = vld [vmem:[%s251 + $0x28] sm:$0xf]
      %v272 = vld [vmem:[%s251 + $0x30] sm:$0xf]
      %v273 = vld [vmem:[%s251 + $0x34] sm:$0xf]
      %v274 = vld [vmem:[%s251 + $0x3c] sm:$0xf]
      %v275 = vld [vmem:[%s251 + $0x40] sm:$0xf]
      %v276 = vld [vmem:[%s251 + $0x48] sm:$0xf]
      %v277 = vld [vmem:[%s251 + $0x4c] sm:$0xf]
      %v278 = vld [vmem:[%s251 + $0x54] sm:$0xf]
      %v279 = vld [vmem:[%s251 + $0x58] sm:$0xf]
      %v280 = vunpack.c.l.bf16 %v264
      %v281 = vunpack.c.l.bf16 %v265
      %v282 = vunpack.c.l.bf16 %v266
      %v283 = vunpack.c.l.bf16 %v267
      %v284 = vunpack.c.l.bf16 %v268
      %v285 = vunpack.c.l.bf16 %v269
      %v286 = vunpack.c.l.bf16 %v270
      %v287 = vunpack.c.l.bf16 %v271
      %v288 = vunpack.c.l.bf16 %v272
      %v289 = vunpack.c.l.bf16 %v273
      %v290 = vunpack.c.l.bf16 %v274
      %v291 = vunpack.c.l.bf16 %v275
      %v292 = vunpack.c.l.bf16 %v276
      %v293 = vunpack.c.l.bf16 %v277
      %v294 = vunpack.c.l.bf16 %v278
      %v295 = vunpack.c.l.bf16 %v279
      %v296 = vlaneseq
      %v297 = vshrl.u32 %v296, 7
      %v298 = vsub.s32 0, %v297
      %v299 = vrot.slane %v262, %v298
      %v300 = vmul.f32 %v280, %v299
      %v301 = vmul.f32 %v281, %v299
      %v302 = vmul.f32 %v282, %v299
      %v303 = vmul.f32 %v283, %v299
      %v304 = vmul.f32 %v284, %v299
      %v305 = vmul.f32 %v285, %v299
      %v306 = vmul.f32 %v286, %v299
      %v307 = vmul.f32 %v287, %v299
      %v308 = vmul.f32 %v288, %v299
      %v309 = vmul.f32 %v289, %v299
      %v310 = vmul.f32 %v290, %v299
      %v311 = vmul.f32 %v291, %v299
      %v312 = vmul.f32 %v292, %v299
      %v313 = vmul.f32 %v293, %v299
      %v314 = vmul.f32 %v294, %v299
      %v315 = vmul.f32 %v295, %v299
      %v316 = vadd.f32 %v300, 0.0
      %v317 = vadd.f32 %v301, 0.0
      %v318 = vadd.f32 %v302, 0.0
      %v319 = vadd.f32 %v303, 0.0
      %v320 = vadd.f32 %v304, 0.0
      %v321 = vadd.f32 %v305, 0.0
      %v322 = vadd.f32 %v306, 0.0
      %v323 = vadd.f32 %v307, 0.0
      %v324 = vadd.f32 %v308, 0.0
      %v325 = vadd.f32 %v309, 0.0
      %v326 = vadd.f32 %v310, 0.0
      %v327 = vadd.f32 %v311, 0.0
      %v328 = vadd.f32 %v312, 0.0
      %v329 = vadd.f32 %v313, 0.0
      %v330 = vadd.f32 %v314, 0.0
      %v331 = vadd.f32 %v315, 0.0
      %v332 = vld [vmem:[%s251 + $0x8] sm:$0x1]
      %v333 = vld [vmem:[%s251 + $0x14] sm:$0x1]
      %v334 = vld [vmem:[%s251 + $0x20] sm:$0x1]
      %v335 = vld [vmem:[%s251 + $0x2c] sm:$0x1]
      %v336 = vld [vmem:[%s251 + $0x38] sm:$0x1]
      %v337 = vld [vmem:[%s251 + $0x44] sm:$0x1]
      %v338 = vld [vmem:[%s251 + $0x50] sm:$0x1]
      %v339 = vld [vmem:[%s251 + $0x5c] sm:$0x1]
      %v340 = vunpack.c.l.bf16 %v332
      %v341 = vunpack.c.l.bf16 %v333
      %v342 = vunpack.c.l.bf16 %v334
      %v343 = vunpack.c.l.bf16 %v335
      %v344 = vunpack.c.l.bf16 %v336
      %v345 = vunpack.c.l.bf16 %v337
      %v346 = vunpack.c.l.bf16 %v338
      %v347 = vunpack.c.l.bf16 %v339
      %v348 = vlaneseq
      %v349 = vshrl.u32 %v348, 7
      %v350 = vsub.s32 1, %v349
      %v351 = vrot.slane %v262, %v350
      %v352 = vmul.f32 %v280, %v351
      %v353 = vmul.f32 %v281, %v351
      %v354 = vmul.f32 %v340, %v351
      %v355 = vmul.f32 %v282, %v351
      %v356 = vmul.f32 %v283, %v351
      %v357 = vmul.f32 %v341, %v351
      %v358 = vmul.f32 %v284, %v351
      %v359 = vmul.f32 %v285, %v351
      %v360 = vmul.f32 %v342, %v351
      %v361 = vmul.f32 %v286, %v351
      %v362 = vmul.f32 %v287, %v351
      %v363 = vmul.f32 %v343, %v351
      %v364 = vmul.f32 %v288, %v351
      %v365 = vmul.f32 %v289, %v351
      %v366 = vmul.f32 %v344, %v351
      %v367 = vmul.f32 %v290, %v351
      %v368 = vmul.f32 %v291, %v351
      %v369 = vmul.f32 %v345, %v351
      %v370 = vmul.f32 %v292, %v351
      %v371 = vmul.f32 %v293, %v351
      %v372 = vmul.f32 %v346, %v351
      %v373 = vmul.f32 %v294, %v351
      %v374 = vmul.f32 %v295, %v351
      %v375 = vmul.f32 %v347, %v351
      %vm400 = vcmask 1046528
      %v401 = vrot.slane %v352, 1
      %v402 = vrot.slane %v353, 1
      %v403 = vsel %vm400, %v401, %v402
      %v404 = vrot.slane %v354, 1
      %v405 = vsel %vm400, %v402, %v404
      %v406 = vrot.slane %v355, 1
      %v407 = vrot.slane %v356, 1
      %v408 = vsel %vm400, %v406, %v407
      %v409 = vrot.slane %v357, 1
      %v410 = vsel %vm400, %v407, %v409
      %v411 = vrot.slane %v358, 1
      %v412 = vrot.slane %v359, 1
      %v413 = vsel %vm400, %v411, %v412
      %v414 = vrot.slane %v360, 1
      %v415 = vsel %vm400, %v412, %v414
      %v416 = vrot.slane %v361, 1
      %v417 = vrot.slane %v362, 1
      %v418 = vsel %vm400, %v416, %v417
      %v419 = vrot.slane %v363, 1
      %v420 = vsel %vm400, %v417, %v419
      %v421 = vrot.slane %v364, 1
      %v422 = vrot.slane %v365, 1
      %v423 = vsel %vm400, %v421, %v422
      %v424 = vrot.slane %v366, 1
      %v425 = vsel %vm400, %v422, %v424
      %v426 = vrot.slane %v367, 1
      %v427 = vrot.slane %v368, 1
      %v428 = vsel %vm400, %v426, %v427
      %v429 = vrot.slane %v369, 1
      %v430 = vsel %vm400, %v427, %v429
      %v431 = vrot.slane %v370, 1
      %v432 = vrot.slane %v371, 1
      %v433 = vsel %vm400, %v431, %v432
      %v434 = vrot.slane %v372, 1
      %v435 = vsel %vm400, %v432, %v434
      %v436 = vrot.slane %v373, 1
      %v437 = vrot.slane %v374, 1
      %v438 = vsel %vm400, %v436, %v437
      %v439 = vrot.slane %v375, 1
      %v440 = vsel %vm400, %v437, %v439
      %v457 = vadd.f32 %v316, %v403
      %v458 = vadd.f32 %v317, %v405
      %v459 = vadd.f32 %v318, %v408
      %v460 = vadd.f32 %v319, %v410
      %v461 = vadd.f32 %v320, %v413
      %v462 = vadd.f32 %v321, %v415
      %v463 = vadd.f32 %v322, %v418
      %v464 = vadd.f32 %v323, %v420
      %v465 = vadd.f32 %v324, %v423
      %v466 = vadd.f32 %v325, %v425
      %v467 = vadd.f32 %v326, %v428
      %v468 = vadd.f32 %v327, %v430
      %v469 = vadd.f32 %v328, %v433
      %v470 = vadd.f32 %v329, %v435
      %v471 = vadd.f32 %v330, %v438
      %v472 = vadd.f32 %v331, %v440
      %v473 = vld [vmem:[%s251] sm:$0xe]
      %v474 = vld [vmem:[%s251 + $0xc] sm:$0xe]
      %v475 = vld [vmem:[%s251 + $0x18] sm:$0xe]
      %v476 = vld [vmem:[%s251 + $0x24] sm:$0xe]
      %v477 = vld [vmem:[%s251 + $0x30] sm:$0xe]
      %v478 = vld [vmem:[%s251 + $0x3c] sm:$0xe]
      %v479 = vld [vmem:[%s251 + $0x48] sm:$0xe]
      %v480 = vld [vmem:[%s251 + $0x54] sm:$0xe]
      %v481 = vunpack.c.l.bf16 %v473
      %v482 = vunpack.c.l.bf16 %v474
      %v483 = vunpack.c.l.bf16 %v475
      %v484 = vunpack.c.l.bf16 %v476
      %v485 = vunpack.c.l.bf16 %v477
      %v486 = vunpack.c.l.bf16 %v478
      %v487 = vunpack.c.l.bf16 %v479
      %v488 = vunpack.c.l.bf16 %v480
      %v489 = vlaneseq
      %v490 = vshrl.u32 %v489, 7
      %v491 = vsub.s32 2, %v490
      %v492 = vrot.slane %v262, %v491
      %v493 = vmul.f32 %v481, %v492
      %v494 = vmul.f32 %v281, %v492
      %v495 = vmul.f32 %v340, %v492
      %v496 = vmul.f32 %v482, %v492
      %v497 = vmul.f32 %v283, %v492
      %v498 = vmul.f32 %v341, %v492
      %v499 = vmul.f32 %v483, %v492
      %v500 = vmul.f32 %v285, %v492
      %v501 = vmul.f32 %v342, %v492
      %v502 = vmul.f32 %v484, %v492
      %v503 = vmul.f32 %v287, %v492
      %v504 = vmul.f32 %v343, %v492
      %v505 = vmul.f32 %v485, %v492
      %v506 = vmul.f32 %v289, %v492
      %v507 = vmul.f32 %v344, %v492
      %v508 = vmul.f32 %v486, %v492
      %v509 = vmul.f32 %v291, %v492
      %v510 = vmul.f32 %v345, %v492
      %v511 = vmul.f32 %v487, %v492
      %v512 = vmul.f32 %v293, %v492
      %v513 = vmul.f32 %v346, %v492
      %v514 = vmul.f32 %v488, %v492
      %v515 = vmul.f32 %v295, %v492
      %v516 = vmul.f32 %v347, %v492
      %vm541 = vcmask 1045504
      %v542 = vrot.slane %v493, 2
      %v543 = vrot.slane %v494, 2
      %v544 = vsel %vm541, %v542, %v543
      %v545 = vrot.slane %v495, 2
      %v546 = vsel %vm541, %v543, %v545
      %v547 = vrot.slane %v496, 2
      %v548 = vrot.slane %v497, 2
      %v549 = vsel %vm541, %v547, %v548
      %v550 = vrot.slane %v498, 2
      %v551 = vsel %vm541, %v548, %v550
      %v552 = vrot.slane %v499, 2
      %v553 = vrot.slane %v500, 2
      %v554 = vsel %vm541, %v552, %v553
      %v555 = vrot.slane %v501, 2
      %v556 = vsel %vm541, %v553, %v555
      %v557 = vrot.slane %v502, 2
      %v558 = vrot.slane %v503, 2
      %v559 = vsel %vm541, %v557, %v558
      %v560 = vrot.slane %v504, 2
      %v561 = vsel %vm541, %v558, %v560
      %v562 = vrot.slane %v505, 2
      %v563 = vrot.slane %v506, 2
      %v564 = vsel %vm541, %v562, %v563
      %v565 = vrot.slane %v507, 2
      %v566 = vsel %vm541, %v563, %v565
      %v567 = vrot.slane %v508, 2
      %v568 = vrot.slane %v509, 2
      %v569 = vsel %vm541, %v567, %v568
      %v570 = vrot.slane %v510, 2
      %v571 = vsel %vm541, %v568, %v570
      %v572 = vrot.slane %v511, 2
      %v573 = vrot.slane %v512, 2
      %v574 = vsel %vm541, %v572, %v573
      %v575 = vrot.slane %v513, 2
      %v576 = vsel %vm541, %v573, %v575
      %v577 = vrot.slane %v514, 2
      %v578 = vrot.slane %v515, 2
      %v579 = vsel %vm541, %v577, %v578
      %v580 = vrot.slane %v516, 2
      %v581 = vsel %vm541, %v578, %v580
      %v598 = vadd.f32 %v457, %v544
      %v599 = vadd.f32 %v458, %v546
      %v600 = vadd.f32 %v459, %v549
      %v601 = vadd.f32 %v460, %v551
      %v602 = vadd.f32 %v461, %v554
      %v603 = vadd.f32 %v462, %v556
      %v604 = vadd.f32 %v463, %v559
      %v605 = vadd.f32 %v464, %v561
      %v606 = vadd.f32 %v465, %v564
      %v607 = vadd.f32 %v466, %v566
      %v608 = vadd.f32 %v467, %v569
      %v609 = vadd.f32 %v468, %v571
      %v610 = vadd.f32 %v469, %v574
      %v611 = vadd.f32 %v470, %v576
      %v612 = vadd.f32 %v471, %v579
      %v613 = vadd.f32 %v472, %v581
      %s614 = scalar_lea.vmem %s251, 12
      %v615 = vld [vmem:[%s614] sm:$0xf]
      %v616 = vld [vmem:[%s614 + $0x4] sm:$0xf]
      %v617 = vld [vmem:[%s614 + $0xc] sm:$0xf]
      %v618 = vld [vmem:[%s614 + $0x10] sm:$0xf]
      %v619 = vld [vmem:[%s614 + $0x18] sm:$0xf]
      %v620 = vld [vmem:[%s614 + $0x1c] sm:$0xf]
      %v621 = vld [vmem:[%s614 + $0x24] sm:$0xf]
      %v622 = vld [vmem:[%s614 + $0x28] sm:$0xf]
      %v623 = vld [vmem:[%s614 + $0x30] sm:$0xf]
      %v624 = vld [vmem:[%s614 + $0x34] sm:$0xf]
      %v625 = vld [vmem:[%s614 + $0x3c] sm:$0xf]
      %v626 = vld [vmem:[%s614 + $0x40] sm:$0xf]
      %v627 = vld [vmem:[%s614 + $0x48] sm:$0xf]
      %v628 = vld [vmem:[%s614 + $0x4c] sm:$0xf]
      %v629 = vld [vmem:[%s614 + $0x54] sm:$0xf]
      %v630 = vld [vmem:[%s614 + $0x58] sm:$0xf]
      %v631 = vunpack.c.l.bf16 %v615
      %v632 = vunpack.c.l.bf16 %v616
      %v633 = vunpack.c.l.bf16 %v617
      %v634 = vunpack.c.l.bf16 %v618
      %v635 = vunpack.c.l.bf16 %v619
      %v636 = vunpack.c.l.bf16 %v620
      %v637 = vunpack.c.l.bf16 %v621
      %v638 = vunpack.c.l.bf16 %v622
      %v639 = vunpack.c.l.bf16 %v623
      %v640 = vunpack.c.l.bf16 %v624
      %v641 = vunpack.c.l.bf16 %v625
      %v642 = vunpack.c.l.bf16 %v626
      %v643 = vunpack.c.l.bf16 %v627
      %v644 = vunpack.c.l.bf16 %v628
      %v645 = vunpack.c.l.bf16 %v629
      %v646 = vunpack.c.l.bf16 %v630
      %v647 = vlaneseq
      %v648 = vshrl.u32 %v647, 7
      %v649 = vsub.s32 3, %v648
      %v650 = vrot.slane %v262, %v649
      %v651 = vmul.f32 %v631, %v650
      %v652 = vmul.f32 %v632, %v650
      %v653 = vmul.f32 %v633, %v650
      %v654 = vmul.f32 %v634, %v650
      %v655 = vmul.f32 %v635, %v650
      %v656 = vmul.f32 %v636, %v650
      %v657 = vmul.f32 %v637, %v650
      %v658 = vmul.f32 %v638, %v650
      %v659 = vmul.f32 %v639, %v650
      %v660 = vmul.f32 %v640, %v650
      %v661 = vmul.f32 %v641, %v650
      %v662 = vmul.f32 %v642, %v650
      %v663 = vmul.f32 %v643, %v650
      %v664 = vmul.f32 %v644, %v650
      %v665 = vmul.f32 %v645, %v650
      %v666 = vmul.f32 %v646, %v650
      %v667 = vadd.f32 %v598, %v651
      %v668 = vadd.f32 %v599, %v652
      %v669 = vadd.f32 %v600, %v653
      %v670 = vadd.f32 %v601, %v654
      %v671 = vadd.f32 %v602, %v655
      %v672 = vadd.f32 %v603, %v656
      %v673 = vadd.f32 %v604, %v657
      %v674 = vadd.f32 %v605, %v658
      %v675 = vadd.f32 %v606, %v659
      %v676 = vadd.f32 %v607, %v660
      %v677 = vadd.f32 %v608, %v661
      %v678 = vadd.f32 %v609, %v662
      %v679 = vadd.f32 %v610, %v663
      %v680 = vadd.f32 %v611, %v664
      %v681 = vadd.f32 %v612, %v665
      %v682 = vadd.f32 %v613, %v666
      %v683 = vld [vmem:[%s614 + $0x8] sm:$0x1]
      %v684 = vld [vmem:[%s614 + $0x14] sm:$0x1]
      %v685 = vld [vmem:[%s614 + $0x20] sm:$0x1]
      %v686 = vld [vmem:[%s614 + $0x2c] sm:$0x1]
      %v687 = vld [vmem:[%s614 + $0x38] sm:$0x1]
      %v688 = vld [vmem:[%s614 + $0x44] sm:$0x1]
      %v689 = vld [vmem:[%s614 + $0x50] sm:$0x1]
      %v690 = vld [vmem:[%s614 + $0x5c] sm:$0x1]
      %v691 = vunpack.c.l.bf16 %v683
      %v692 = vunpack.c.l.bf16 %v684
      %v693 = vunpack.c.l.bf16 %v685
      %v694 = vunpack.c.l.bf16 %v686
      %v695 = vunpack.c.l.bf16 %v687
      %v696 = vunpack.c.l.bf16 %v688
      %v697 = vunpack.c.l.bf16 %v689
      %v698 = vunpack.c.l.bf16 %v690
      %v699 = vlaneseq
      %v700 = vshrl.u32 %v699, 7
      %v701 = vsub.s32 4, %v700
      %v702 = vrot.slane %v262, %v701
      %v703 = vmul.f32 %v631, %v702
      %v704 = vmul.f32 %v632, %v702
      %v705 = vmul.f32 %v691, %v702
      %v706 = vmul.f32 %v633, %v702
      %v707 = vmul.f32 %v634, %v702
      %v708 = vmul.f32 %v692, %v702
      %v709 = vmul.f32 %v635, %v702
      %v710 = vmul.f32 %v636, %v702
      %v711 = vmul.f32 %v693, %v702
      %v712 = vmul.f32 %v637, %v702
      %v713 = vmul.f32 %v638, %v702
      %v714 = vmul.f32 %v694, %v702
      %v715 = vmul.f32 %v639, %v702
      %v716 = vmul.f32 %v640, %v702
      %v717 = vmul.f32 %v695, %v702
      %v718 = vmul.f32 %v641, %v702
      %v719 = vmul.f32 %v642, %v702
      %v720 = vmul.f32 %v696, %v702
      %v721 = vmul.f32 %v643, %v702
      %v722 = vmul.f32 %v644, %v702
      %v723 = vmul.f32 %v697, %v702
      %v724 = vmul.f32 %v645, %v702
      %v725 = vmul.f32 %v646, %v702
      %v726 = vmul.f32 %v698, %v702
      %v751 = vrot.slane %v703, 1
      %v752 = vrot.slane %v704, 1
      %v753 = vsel %vm400, %v751, %v752
      %v754 = vrot.slane %v705, 1
      %v755 = vsel %vm400, %v752, %v754
      %v756 = vrot.slane %v706, 1
      %v757 = vrot.slane %v707, 1
      %v758 = vsel %vm400, %v756, %v757
      %v759 = vrot.slane %v708, 1
      %v760 = vsel %vm400, %v757, %v759
      %v761 = vrot.slane %v709, 1
      %v762 = vrot.slane %v710, 1
      %v763 = vsel %vm400, %v761, %v762
      %v764 = vrot.slane %v711, 1
      %v765 = vsel %vm400, %v762, %v764
      %v766 = vrot.slane %v712, 1
      %v767 = vrot.slane %v713, 1
      %v768 = vsel %vm400, %v766, %v767
      %v769 = vrot.slane %v714, 1
      %v770 = vsel %vm400, %v767, %v769
      %v771 = vrot.slane %v715, 1
      %v772 = vrot.slane %v716, 1
      %v773 = vsel %vm400, %v771, %v772
      %v774 = vrot.slane %v717, 1
      %v775 = vsel %vm400, %v772, %v774
      %v776 = vrot.slane %v718, 1
      %v777 = vrot.slane %v719, 1
      %v778 = vsel %vm400, %v776, %v777
      %v779 = vrot.slane %v720, 1
      %v780 = vsel %vm400, %v777, %v779
      %v781 = vrot.slane %v721, 1
      %v782 = vrot.slane %v722, 1
      %v783 = vsel %vm400, %v781, %v782
      %v784 = vrot.slane %v723, 1
      %v785 = vsel %vm400, %v782, %v784
      %v786 = vrot.slane %v724, 1
      %v787 = vrot.slane %v725, 1
      %v788 = vsel %vm400, %v786, %v787
      %v789 = vrot.slane %v726, 1
      %v790 = vsel %vm400, %v787, %v789
      %v807 = vadd.f32 %v667, %v753
      %v808 = vadd.f32 %v668, %v755
      %v809 = vadd.f32 %v669, %v758
      %v810 = vadd.f32 %v670, %v760
      %v811 = vadd.f32 %v671, %v763
      %v812 = vadd.f32 %v672, %v765
      %v813 = vadd.f32 %v673, %v768
      %v814 = vadd.f32 %v674, %v770
      %v815 = vadd.f32 %v675, %v773
      %v816 = vadd.f32 %v676, %v775
      %v817 = vadd.f32 %v677, %v778
      %v818 = vadd.f32 %v678, %v780
      %v819 = vadd.f32 %v679, %v783
      %v820 = vadd.f32 %v680, %v785
      %v821 = vadd.f32 %v681, %v788
      %v822 = vadd.f32 %v682, %v790
      %v823 = vld [vmem:[%s614] sm:$0xe]
      %v824 = vld [vmem:[%s614 + $0xc] sm:$0xe]
      %v825 = vld [vmem:[%s614 + $0x18] sm:$0xe]
      %v826 = vld [vmem:[%s614 + $0x24] sm:$0xe]
      %v827 = vld [vmem:[%s614 + $0x30] sm:$0xe]
      %v828 = vld [vmem:[%s614 + $0x3c] sm:$0xe]
      %v829 = vld [vmem:[%s614 + $0x48] sm:$0xe]
      %v830 = vld [vmem:[%s614 + $0x54] sm:$0xe]
      %v831 = vunpack.c.l.bf16 %v823
      %v832 = vunpack.c.l.bf16 %v824
      %v833 = vunpack.c.l.bf16 %v825
      %v834 = vunpack.c.l.bf16 %v826
      %v835 = vunpack.c.l.bf16 %v827
      %v836 = vunpack.c.l.bf16 %v828
      %v837 = vunpack.c.l.bf16 %v829
      %v838 = vunpack.c.l.bf16 %v830
      %v839 = vlaneseq
      %v840 = vshrl.u32 %v839, 7
      %v841 = vsub.s32 5, %v840
      %v842 = vrot.slane %v262, %v841
      %v843 = vmul.f32 %v831, %v842
      %v844 = vmul.f32 %v632, %v842
      %v845 = vmul.f32 %v691, %v842
      %v846 = vmul.f32 %v832, %v842
      %v847 = vmul.f32 %v634, %v842
      %v848 = vmul.f32 %v692, %v842
      %v849 = vmul.f32 %v833, %v842
      %v850 = vmul.f32 %v636, %v842
      %v851 = vmul.f32 %v693, %v842
      %v852 = vmul.f32 %v834, %v842
      %v853 = vmul.f32 %v638, %v842
      %v854 = vmul.f32 %v694, %v842
      %v855 = vmul.f32 %v835, %v842
      %v856 = vmul.f32 %v640, %v842
      %v857 = vmul.f32 %v695, %v842
      %v858 = vmul.f32 %v836, %v842
      %v859 = vmul.f32 %v642, %v842
      %v860 = vmul.f32 %v696, %v842
      %v861 = vmul.f32 %v837, %v842
      %v862 = vmul.f32 %v644, %v842
      %v863 = vmul.f32 %v697, %v842
      %v864 = vmul.f32 %v838, %v842
      %v865 = vmul.f32 %v646, %v842
      %v866 = vmul.f32 %v698, %v842
      %v891 = vrot.slane %v843, 2
      %v892 = vrot.slane %v844, 2
      %v893 = vsel %vm541, %v891, %v892
      %v894 = vrot.slane %v845, 2
      %v895 = vsel %vm541, %v892, %v894
      %v896 = vrot.slane %v846, 2
      %v897 = vrot.slane %v847, 2
      %v898 = vsel %vm541, %v896, %v897
      %v899 = vrot.slane %v848, 2
      %v900 = vsel %vm541, %v897, %v899
      %v901 = vrot.slane %v849, 2
      %v902 = vrot.slane %v850, 2
      %v903 = vsel %vm541, %v901, %v902
      %v904 = vrot.slane %v851, 2
      %v905 = vsel %vm541, %v902, %v904
      %v906 = vrot.slane %v852, 2
      %v907 = vrot.slane %v853, 2
      %v908 = vsel %vm541, %v906, %v907
      %v909 = vrot.slane %v854, 2
      %v910 = vsel %vm541, %v907, %v909
      %v911 = vrot.slane %v855, 2
      %v912 = vrot.slane %v856, 2
      %v913 = vsel %vm541, %v911, %v912
      %v914 = vrot.slane %v857, 2
      %v915 = vsel %vm541, %v912, %v914
      %v916 = vrot.slane %v858, 2
      %v917 = vrot.slane %v859, 2
      %v918 = vsel %vm541, %v916, %v917
      %v919 = vrot.slane %v860, 2
      %v920 = vsel %vm541, %v917, %v919
      %v921 = vrot.slane %v861, 2
      %v922 = vrot.slane %v862, 2
      %v923 = vsel %vm541, %v921, %v922
      %v924 = vrot.slane %v863, 2
      %v925 = vsel %vm541, %v922, %v924
      %v926 = vrot.slane %v864, 2
      %v927 = vrot.slane %v865, 2
      %v928 = vsel %vm541, %v926, %v927
      %v929 = vrot.slane %v866, 2
      %v930 = vsel %vm541, %v927, %v929
      %v947 = vadd.f32 %v807, %v893
      %v948 = vadd.f32 %v808, %v895
      %v949 = vadd.f32 %v809, %v898
      %v950 = vadd.f32 %v810, %v900
      %v951 = vadd.f32 %v811, %v903
      %v952 = vadd.f32 %v812, %v905
      %v953 = vadd.f32 %v813, %v908
      %v954 = vadd.f32 %v814, %v910
      %v955 = vadd.f32 %v815, %v913
      %v956 = vadd.f32 %v816, %v915
      %v957 = vadd.f32 %v817, %v918
      %v958 = vadd.f32 %v818, %v920
      %v959 = vadd.f32 %v819, %v923
      %v960 = vadd.f32 %v820, %v925
      %v961 = vadd.f32 %v821, %v928
      %v962 = vadd.f32 %v822, %v930
      %s963 = scalar_lea.vmem %s251, 24
      %v964 = vld [vmem:[%s963] sm:$0xf]
      %v965 = vld [vmem:[%s963 + $0x4] sm:$0xf]
      %v966 = vld [vmem:[%s963 + $0xc] sm:$0xf]
      %v967 = vld [vmem:[%s963 + $0x10] sm:$0xf]
      %v968 = vld [vmem:[%s963 + $0x18] sm:$0xf]
      %v969 = vld [vmem:[%s963 + $0x1c] sm:$0xf]
      %v970 = vld [vmem:[%s963 + $0x24] sm:$0xf]
      %v971 = vld [vmem:[%s963 + $0x28] sm:$0xf]
      %v972 = vld [vmem:[%s963 + $0x30] sm:$0xf]
      %v973 = vld [vmem:[%s963 + $0x34] sm:$0xf]
      %v974 = vld [vmem:[%s963 + $0x3c] sm:$0xf]
      %v975 = vld [vmem:[%s963 + $0x40] sm:$0xf]
      %v976 = vld [vmem:[%s963 + $0x48] sm:$0xf]
      %v977 = vld [vmem:[%s963 + $0x4c] sm:$0xf]
      %v978 = vld [vmem:[%s963 + $0x54] sm:$0xf]
      %v979 = vld [vmem:[%s963 + $0x58] sm:$0xf]
      %v980 = vunpack.c.l.bf16 %v964
      %v981 = vunpack.c.l.bf16 %v965
      %v982 = vunpack.c.l.bf16 %v966
      %v983 = vunpack.c.l.bf16 %v967
      %v984 = vunpack.c.l.bf16 %v968
      %v985 = vunpack.c.l.bf16 %v969
      %v986 = vunpack.c.l.bf16 %v970
      %v987 = vunpack.c.l.bf16 %v971
      %v988 = vunpack.c.l.bf16 %v972
      %v989 = vunpack.c.l.bf16 %v973
      %v990 = vunpack.c.l.bf16 %v974
      %v991 = vunpack.c.l.bf16 %v975
      %v992 = vunpack.c.l.bf16 %v976
      %v993 = vunpack.c.l.bf16 %v977
      %v994 = vunpack.c.l.bf16 %v978
      %v995 = vunpack.c.l.bf16 %v979
      %v996 = vlaneseq
      %v997 = vshrl.u32 %v996, 7
      %v998 = vsub.s32 6, %v997
      %v999 = vrot.slane %v262, %v998
      %v1000 = vmul.f32 %v980, %v999
      %v1001 = vmul.f32 %v981, %v999
      %v1002 = vmul.f32 %v982, %v999
      %v1003 = vmul.f32 %v983, %v999
      %v1004 = vmul.f32 %v984, %v999
      %v1005 = vmul.f32 %v985, %v999
      %v1006 = vmul.f32 %v986, %v999
      %v1007 = vmul.f32 %v987, %v999
      %v1008 = vmul.f32 %v988, %v999
      %v1009 = vmul.f32 %v989, %v999
      %v1010 = vmul.f32 %v990, %v999
      %v1011 = vmul.f32 %v991, %v999
      %v1012 = vmul.f32 %v992, %v999
      %v1013 = vmul.f32 %v993, %v999
      %v1014 = vmul.f32 %v994, %v999
      %v1015 = vmul.f32 %v995, %v999
      %v1016 = vadd.f32 %v947, %v1000
      %v1017 = vadd.f32 %v948, %v1001
      %v1018 = vadd.f32 %v949, %v1002
      %v1019 = vadd.f32 %v950, %v1003
      %v1020 = vadd.f32 %v951, %v1004
      %v1021 = vadd.f32 %v952, %v1005
      %v1022 = vadd.f32 %v953, %v1006
      %v1023 = vadd.f32 %v954, %v1007
      %v1024 = vadd.f32 %v955, %v1008
      %v1025 = vadd.f32 %v956, %v1009
      %v1026 = vadd.f32 %v957, %v1010
      %v1027 = vadd.f32 %v958, %v1011
      %v1028 = vadd.f32 %v959, %v1012
      %v1029 = vadd.f32 %v960, %v1013
      %v1030 = vadd.f32 %v961, %v1014
      %v1031 = vadd.f32 %v962, %v1015
      %v1032 = vld [vmem:[%s963 + $0x8] sm:$0x1]
      %v1033 = vld [vmem:[%s963 + $0x14] sm:$0x1]
      %v1034 = vld [vmem:[%s963 + $0x20] sm:$0x1]
      %v1035 = vld [vmem:[%s963 + $0x2c] sm:$0x1]
      %v1036 = vld [vmem:[%s963 + $0x38] sm:$0x1]
      %v1037 = vld [vmem:[%s963 + $0x44] sm:$0x1]
      %v1038 = vld [vmem:[%s963 + $0x50] sm:$0x1]
      %v1039 = vld [vmem:[%s963 + $0x5c] sm:$0x1]
      %v1040 = vunpack.c.l.bf16 %v1032
      %v1041 = vunpack.c.l.bf16 %v1033
      %v1042 = vunpack.c.l.bf16 %v1034
      %v1043 = vunpack.c.l.bf16 %v1035
      %v1044 = vunpack.c.l.bf16 %v1036
      %v1045 = vunpack.c.l.bf16 %v1037
      %v1046 = vunpack.c.l.bf16 %v1038
      %v1047 = vunpack.c.l.bf16 %v1039
      %v1048 = vlaneseq
      %v1049 = vshrl.u32 %v1048, 7
      %v1050 = vsub.s32 7, %v1049
      %v1051 = vrot.slane %v262, %v1050
      %v1052 = vmul.f32 %v980, %v1051
      %v1053 = vmul.f32 %v981, %v1051
      %v1054 = vmul.f32 %v1040, %v1051
      %v1055 = vmul.f32 %v982, %v1051
      %v1056 = vmul.f32 %v983, %v1051
      %v1057 = vmul.f32 %v1041, %v1051
      %v1058 = vmul.f32 %v984, %v1051
      %v1059 = vmul.f32 %v985, %v1051
      %v1060 = vmul.f32 %v1042, %v1051
      %v1061 = vmul.f32 %v986, %v1051
      %v1062 = vmul.f32 %v987, %v1051
      %v1063 = vmul.f32 %v1043, %v1051
      %v1064 = vmul.f32 %v988, %v1051
      %v1065 = vmul.f32 %v989, %v1051
      %v1066 = vmul.f32 %v1044, %v1051
      %v1067 = vmul.f32 %v990, %v1051
      %v1068 = vmul.f32 %v991, %v1051
      %v1069 = vmul.f32 %v1045, %v1051
      %v1070 = vmul.f32 %v992, %v1051
      %v1071 = vmul.f32 %v993, %v1051
      %v1072 = vmul.f32 %v1046, %v1051
      %v1073 = vmul.f32 %v994, %v1051
      %v1074 = vmul.f32 %v995, %v1051
      %v1075 = vmul.f32 %v1047, %v1051
      %v1100 = vrot.slane %v1052, 1
      %v1101 = vrot.slane %v1053, 1
      %v1102 = vsel %vm400, %v1100, %v1101
      %v1103 = vrot.slane %v1054, 1
      %v1104 = vsel %vm400, %v1101, %v1103
      %v1105 = vrot.slane %v1055, 1
      %v1106 = vrot.slane %v1056, 1
      %v1107 = vsel %vm400, %v1105, %v1106
      %v1108 = vrot.slane %v1057, 1
      %v1109 = vsel %vm400, %v1106, %v1108
      %v1110 = vrot.slane %v1058, 1
      %v1111 = vrot.slane %v1059, 1
      %v1112 = vsel %vm400, %v1110, %v1111
      %v1113 = vrot.slane %v1060, 1
      %v1114 = vsel %vm400, %v1111, %v1113
      %v1115 = vrot.slane %v1061, 1
      %v1116 = vrot.slane %v1062, 1
      %v1117 = vsel %vm400, %v1115, %v1116
      %v1118 = vrot.slane %v1063, 1
      %v1119 = vsel %vm400, %v1116, %v1118
      %v1120 = vrot.slane %v1064, 1
      %v1121 = vrot.slane %v1065, 1
      %v1122 = vsel %vm400, %v1120, %v1121
      %v1123 = vrot.slane %v1066, 1
      %v1124 = vsel %vm400, %v1121, %v1123
      %v1125 = vrot.slane %v1067, 1
      %v1126 = vrot.slane %v1068, 1
      %v1127 = vsel %vm400, %v1125, %v1126
      %v1128 = vrot.slane %v1069, 1
      %v1129 = vsel %vm400, %v1126, %v1128
      %v1130 = vrot.slane %v1070, 1
      %v1131 = vrot.slane %v1071, 1
      %v1132 = vsel %vm400, %v1130, %v1131
      %v1133 = vrot.slane %v1072, 1
      %v1134 = vsel %vm400, %v1131, %v1133
      %v1135 = vrot.slane %v1073, 1
      %v1136 = vrot.slane %v1074, 1
      %v1137 = vsel %vm400, %v1135, %v1136
      %v1138 = vrot.slane %v1075, 1
      %v1139 = vsel %vm400, %v1136, %v1138
      %v1156 = vadd.f32 %v1016, %v1102
      %v1157 = vadd.f32 %v1017, %v1104
      %v1158 = vadd.f32 %v1018, %v1107
      %v1159 = vadd.f32 %v1019, %v1109
      %v1160 = vadd.f32 %v1020, %v1112
      %v1161 = vadd.f32 %v1021, %v1114
      %v1162 = vadd.f32 %v1022, %v1117
      %v1163 = vadd.f32 %v1023, %v1119
      %v1164 = vadd.f32 %v1024, %v1122
      %v1165 = vadd.f32 %v1025, %v1124
      %v1166 = vadd.f32 %v1026, %v1127
      %v1167 = vadd.f32 %v1027, %v1129
      %v1168 = vadd.f32 %v1028, %v1132
      %v1169 = vadd.f32 %v1029, %v1134
      %v1170 = vadd.f32 %v1030, %v1137
      %v1171 = vadd.f32 %v1031, %v1139
      %v1172 = vld [vmem:[%s963] sm:$0xe]
      %v1173 = vld [vmem:[%s963 + $0xc] sm:$0xe]
      %v1174 = vld [vmem:[%s963 + $0x18] sm:$0xe]
      %v1175 = vld [vmem:[%s963 + $0x24] sm:$0xe]
      %v1176 = vld [vmem:[%s963 + $0x30] sm:$0xe]
      %v1177 = vld [vmem:[%s963 + $0x3c] sm:$0xe]
      %v1178 = vld [vmem:[%s963 + $0x48] sm:$0xe]
      %v1179 = vld [vmem:[%s963 + $0x54] sm:$0xe]
      %v1180 = vunpack.c.l.bf16 %v1172
      %v1181 = vunpack.c.l.bf16 %v1173
      %v1182 = vunpack.c.l.bf16 %v1174
      %v1183 = vunpack.c.l.bf16 %v1175
      %v1184 = vunpack.c.l.bf16 %v1176
      %v1185 = vunpack.c.l.bf16 %v1177
      %v1186 = vunpack.c.l.bf16 %v1178
      %v1187 = vunpack.c.l.bf16 %v1179
      %v1188 = vlaneseq
      %v1189 = vshrl.u32 %v1188, 7
      %v1190 = vsub.s32 0, %v1189
      %v1191 = vrot.slane %v263, %v1190
      %v1192 = vmul.f32 %v1180, %v1191
      %v1193 = vmul.f32 %v981, %v1191
      %v1194 = vmul.f32 %v1040, %v1191
      %v1195 = vmul.f32 %v1181, %v1191
      %v1196 = vmul.f32 %v983, %v1191
      %v1197 = vmul.f32 %v1041, %v1191
      %v1198 = vmul.f32 %v1182, %v1191
      %v1199 = vmul.f32 %v985, %v1191
      %v1200 = vmul.f32 %v1042, %v1191
      %v1201 = vmul.f32 %v1183, %v1191
      %v1202 = vmul.f32 %v987, %v1191
      %v1203 = vmul.f32 %v1043, %v1191
      %v1204 = vmul.f32 %v1184, %v1191
      %v1205 = vmul.f32 %v989, %v1191
      %v1206 = vmul.f32 %v1044, %v1191
      %v1207 = vmul.f32 %v1185, %v1191
      %v1208 = vmul.f32 %v991, %v1191
      %v1209 = vmul.f32 %v1045, %v1191
      %v1210 = vmul.f32 %v1186, %v1191
      %v1211 = vmul.f32 %v993, %v1191
      %v1212 = vmul.f32 %v1046, %v1191
      %v1213 = vmul.f32 %v1187, %v1191
      %v1214 = vmul.f32 %v995, %v1191
      %v1215 = vmul.f32 %v1047, %v1191
      %v1240 = vrot.slane %v1192, 2
      %v1241 = vrot.slane %v1193, 2
      %v1242 = vsel %vm541, %v1240, %v1241
      %v1243 = vrot.slane %v1194, 2
      %v1244 = vsel %vm541, %v1241, %v1243
      %v1245 = vrot.slane %v1195, 2
      %v1246 = vrot.slane %v1196, 2
      %v1247 = vsel %vm541, %v1245, %v1246
      %v1248 = vrot.slane %v1197, 2
      %v1249 = vsel %vm541, %v1246, %v1248
      %v1250 = vrot.slane %v1198, 2
      %v1251 = vrot.slane %v1199, 2
      %v1252 = vsel %vm541, %v1250, %v1251
      %v1253 = vrot.slane %v1200, 2
      %v1254 = vsel %vm541, %v1251, %v1253
      %v1255 = vrot.slane %v1201, 2
      %v1256 = vrot.slane %v1202, 2
      %v1257 = vsel %vm541, %v1255, %v1256
      %v1258 = vrot.slane %v1203, 2
      %v1259 = vsel %vm541, %v1256, %v1258
      %v1260 = vrot.slane %v1204, 2
      %v1261 = vrot.slane %v1205, 2
      %v1262 = vsel %vm541, %v1260, %v1261
      %v1263 = vrot.slane %v1206, 2
      %v1264 = vsel %vm541, %v1261, %v1263
      %v1265 = vrot.slane %v1207, 2
      %v1266 = vrot.slane %v1208, 2
      %v1267 = vsel %vm541, %v1265, %v1266
      %v1268 = vrot.slane %v1209, 2
      %v1269 = vsel %vm541, %v1266, %v1268
      %v1270 = vrot.slane %v1210, 2
      %v1271 = vrot.slane %v1211, 2
      %v1272 = vsel %vm541, %v1270, %v1271
      %v1273 = vrot.slane %v1212, 2
      %v1274 = vsel %vm541, %v1271, %v1273
      %v1275 = vrot.slane %v1213, 2
      %v1276 = vrot.slane %v1214, 2
      %v1277 = vsel %vm541, %v1275, %v1276
      %v1278 = vrot.slane %v1215, 2
      %v1279 = vsel %vm541, %v1276, %v1278
      %v1296 = vadd.f32 %v1156, %v1242
      %v1297 = vadd.f32 %v1157, %v1244
      %v1298 = vadd.f32 %v1158, %v1247
      %v1299 = vadd.f32 %v1159, %v1249
      %v1300 = vadd.f32 %v1160, %v1252
      %v1301 = vadd.f32 %v1161, %v1254
      %v1302 = vadd.f32 %v1162, %v1257
      %v1303 = vadd.f32 %v1163, %v1259
      %v1304 = vadd.f32 %v1164, %v1262
      %v1305 = vadd.f32 %v1165, %v1264
      %v1306 = vadd.f32 %v1166, %v1267
      %v1307 = vadd.f32 %v1167, %v1269
      %v1308 = vadd.f32 %v1168, %v1272
      %v1309 = vadd.f32 %v1169, %v1274
      %v1310 = vadd.f32 %v1170, %v1277
      %v1311 = vadd.f32 %v1171, %v1279
      %v1312 = vld [vmem:[%s2] sm:$0x1]
      %v1314 = vlaneseq
      %v1315 = vshrl.u32 %v1314, 7
      %v1316 = vsub.s32 0, %v1315
      %v1317 = vrot.slane %v1312, %v1316
      %v1319 = vadd.f32 %v1296, %v1317
      %v1320 = vadd.f32 %v1297, %v1317
      %v1321 = vadd.f32 %v1298, %v1317
      %v1322 = vadd.f32 %v1299, %v1317
      %v1323 = vadd.f32 %v1300, %v1317
      %v1324 = vadd.f32 %v1301, %v1317
      %v1325 = vadd.f32 %v1302, %v1317
      %v1326 = vadd.f32 %v1303, %v1317
      %v1327 = vadd.f32 %v1304, %v1317
      %v1328 = vadd.f32 %v1305, %v1317
      %v1329 = vadd.f32 %v1306, %v1317
      %v1330 = vadd.f32 %v1307, %v1317
      %v1331 = vadd.f32 %v1308, %v1317
      %v1332 = vadd.f32 %v1309, %v1317
      %v1333 = vadd.f32 %v1310, %v1317
      %v1334 = vadd.f32 %v1311, %v1317
      %vm1335 = vcmp.gt.f32.partialorder %v1319, 0.0
      %vm1336 = vcmp.gt.f32.partialorder %v1320, 0.0
      %vm1337 = vcmp.gt.f32.partialorder %v1321, 0.0
      %vm1338 = vcmp.gt.f32.partialorder %v1322, 0.0
      %vm1339 = vcmp.gt.f32.partialorder %v1323, 0.0
      %vm1340 = vcmp.gt.f32.partialorder %v1324, 0.0
      %vm1341 = vcmp.gt.f32.partialorder %v1325, 0.0
      %vm1342 = vcmp.gt.f32.partialorder %v1326, 0.0
      %vm1343 = vcmp.gt.f32.partialorder %v1327, 0.0
      %vm1344 = vcmp.gt.f32.partialorder %v1328, 0.0
      %vm1345 = vcmp.gt.f32.partialorder %v1329, 0.0
      %vm1346 = vcmp.gt.f32.partialorder %v1330, 0.0
      %vm1347 = vcmp.gt.f32.partialorder %v1331, 0.0
      %vm1348 = vcmp.gt.f32.partialorder %v1332, 0.0
      %vm1349 = vcmp.gt.f32.partialorder %v1333, 0.0
      %vm1350 = vcmp.gt.f32.partialorder %v1334, 0.0
      %v1351 = vmul.f32 %v1319, 0.01
      %v1352 = vmul.f32 %v1320, 0.01
      %v1353 = vmul.f32 %v1321, 0.01
      %v1354 = vmul.f32 %v1322, 0.01
      %v1355 = vmul.f32 %v1323, 0.01
      %v1356 = vmul.f32 %v1324, 0.01
      %v1357 = vmul.f32 %v1325, 0.01
      %v1358 = vmul.f32 %v1326, 0.01
      %v1359 = vmul.f32 %v1327, 0.01
      %v1360 = vmul.f32 %v1328, 0.01
      %v1361 = vmul.f32 %v1329, 0.01
      %v1362 = vmul.f32 %v1330, 0.01
      %v1363 = vmul.f32 %v1331, 0.01
      %v1364 = vmul.f32 %v1332, 0.01
      %v1365 = vmul.f32 %v1333, 0.01
      %v1366 = vmul.f32 %v1334, 0.01
      %v1367 = vsel %vm1335, %v1319, %v1351
      %v1368 = vsel %vm1336, %v1320, %v1352
      %v1369 = vsel %vm1337, %v1321, %v1353
      %v1370 = vsel %vm1338, %v1322, %v1354
      %v1371 = vsel %vm1339, %v1323, %v1355
      %v1372 = vsel %vm1340, %v1324, %v1356
      %v1373 = vsel %vm1341, %v1325, %v1357
      %v1374 = vsel %vm1342, %v1326, %v1358
      %v1375 = vsel %vm1343, %v1327, %v1359
      %v1376 = vsel %vm1344, %v1328, %v1360
      %v1377 = vsel %vm1345, %v1329, %v1361
      %v1378 = vsel %vm1346, %v1330, %v1362
      %v1379 = vsel %vm1347, %v1331, %v1363
      %v1380 = vsel %vm1348, %v1332, %v1364
      %v1381 = vsel %vm1349, %v1333, %v1365
      %v1382 = vsel %vm1350, %v1334, %v1366
      %v1383 = vpack.c.bf16 %v1368, %v1367
      %v1384 = vpack.c.bf16 %v1370, %v1369
      %v1385 = vpack.c.bf16 %v1372, %v1371
      %v1386 = vpack.c.bf16 %v1374, %v1373
      %v1387 = vpack.c.bf16 %v1376, %v1375
      %v1388 = vpack.c.bf16 %v1378, %v1377
      %v1389 = vpack.c.bf16 %v1380, %v1379
      %v1390 = vpack.c.bf16 %v1382, %v1381
      %v1391 = vld [vmem:[%s3] sm:$0xf]
      %v1392 = vld [vmem:[%s4] sm:$0x1]
      %v1394 = vlaneseq
      %v1395 = vshrl.u32 %v1394, 7
      %v1396 = vsub.s32 0, %v1395
      %v1397 = vrot.slane %v1392, %v1396
      %vm1399 = vcmask 64512
      %v1401 = vsel %vm1399, %v1383, 0
      %v1404 = vsel %vm1399, %v1384, 0
      %v1407 = vsel %vm1399, %v1385, 0
      %v1410 = vsel %vm1399, %v1386, 0
      %v1413 = vsel %vm1399, %v1387, 0
      %v1416 = vsel %vm1399, %v1388, 0
      %v1419 = vsel %vm1399, %v1389, 0
      %v1422 = vsel %vm1399, %v1390, 0
      %vm1424 = vcmask 1043456
      %v1426 = vsel %vm1424, %v1391, 0
      %1428 = vmatprep.subr.bf16.mxu0 0
      %1429 = vmatpush1.bf16.msra.mxu0 0
      %1430 = vmatprep.subr.bf16.mxu0 0
      %1431 = vmatpush1.bf16.msra.mxu0 0
      %1432 = vmatprep.subr.bf16.mxu0 0
      %1433 = vmatpush1.bf16.msra.mxu0 0
      %1434 = vmatprep.subr.bf16.mxu0 0
      %1435 = vmatpush1.bf16.msra.mxu0 0
      %1436 = vmatprep.subr.bf16.mxu0 0
      %1437 = vmatpush1.bf16.msra.mxu0 0
      %1438 = vmatprep.subr.bf16.mxu0 0
      %1439 = vmatpush1.bf16.msra.mxu0 0
      %1440 = vmatprep.subr.bf16.mxu0 0
      %1441 = vmatpush1.bf16.msra.mxu0 0
      %1442 = vmatprep.subr.bf16.mxu0 0
      %1443 = vmatpush1.bf16.msra.mxu0 %v1426
      %1444 = vmatprep.subr.bf16.mxu0 0
      %1445 = vmatpush2.bf16.msra.mxu0 0
      %1446 = vmatprep.subr.bf16.mxu0 0
      %1447 = vmatpush2.bf16.msra.mxu0 0
      %1448 = vmatprep.subr.bf16.mxu0 0
      %1449 = vmatpush2.bf16.msra.mxu0 0
      %1450 = vmatprep.subr.bf16.mxu0 0
      %1451 = vmatpush2.bf16.msra.mxu0 0
      %1452 = vmatprep.subr.bf16.mxu0 0
      %1453 = vmatpush2.bf16.msra.mxu0 0
      %1454 = vmatprep.subr.bf16.mxu0 0
      %1455 = vmatpush2.bf16.msra.mxu0 0
      %1456 = vmatprep.subr.bf16.mxu0 0
      %1457 = vmatpush2.bf16.msra.mxu0 0
      %1458 = vmatprep.subr.bf16.mxu0 0
      %1459 = vmatpush2.bf16.msra.mxu0 0
      %1460 = vmatprep.mubr.bf16.mxu0 0
      %1461 = vmatmul.mubr.bf16.gmra.mxu0 %v1401
      %v1462 = vpop.f32.mrf.mxu0
      %v1463 = vadd.f32 %v1397, %v1462
      %v1464 = vpop.f32.mrf.mxu0
      %v1465 = vpop.f32.mrf.mxu0
      %v1466 = vadd.f32 %v1397, %v1465
      %v1467 = vpop.f32.mrf.mxu0
      %1468 = vmatprep.mubr.bf16.mxu0 0
      %1469 = vmatmul.mubr.bf16.gmra.mxu0 %v1404
      %v1470 = vpop.f32.mrf.mxu0
      %v1471 = vadd.f32 %v1397, %v1470
      %v1472 = vpop.f32.mrf.mxu0
      %v1473 = vpop.f32.mrf.mxu0
      %v1474 = vadd.f32 %v1397, %v1473
      %v1475 = vpop.f32.mrf.mxu0
      %1476 = vmatprep.mubr.bf16.mxu0 0
      %1477 = vmatmul.mubr.bf16.gmra.mxu0 %v1407
      %v1478 = vpop.f32.mrf.mxu0
      %v1479 = vadd.f32 %v1397, %v1478
      %v1480 = vpop.f32.mrf.mxu0
      %v1481 = vpop.f32.mrf.mxu0
      %v1482 = vadd.f32 %v1397, %v1481
      %v1483 = vpop.f32.mrf.mxu0
      %1484 = vmatprep.mubr.bf16.mxu0 0
      %1485 = vmatmul.mubr.bf16.gmra.mxu0 %v1410
      %v1486 = vpop.f32.mrf.mxu0
      %v1487 = vadd.f32 %v1397, %v1486
      %v1488 = vpop.f32.mrf.mxu0
      %v1489 = vpop.f32.mrf.mxu0
      %v1490 = vadd.f32 %v1397, %v1489
      %v1491 = vpop.f32.mrf.mxu0
      %1492 = vmatprep.mubr.bf16.mxu0 0
      %1493 = vmatmul.mubr.bf16.gmra.mxu0 %v1413
      %v1494 = vpop.f32.mrf.mxu0
      %v1495 = vadd.f32 %v1397, %v1494
      %v1496 = vpop.f32.mrf.mxu0
      %v1497 = vpop.f32.mrf.mxu0
      %v1498 = vadd.f32 %v1397, %v1497
      %v1499 = vpop.f32.mrf.mxu0
      %1500 = vmatprep.mubr.bf16.mxu0 0
      %1501 = vmatmul.mubr.bf16.gmra.mxu0 %v1416
      %v1502 = vpop.f32.mrf.mxu0
      %v1503 = vadd.f32 %v1397, %v1502
      %v1504 = vpop.f32.mrf.mxu0
      %v1505 = vpop.f32.mrf.mxu0
      %v1506 = vadd.f32 %v1397, %v1505
      %v1507 = vpop.f32.mrf.mxu0
      %1508 = vmatprep.mubr.bf16.mxu0 0
      %1509 = vmatmul.mubr.bf16.gmra.mxu0 %v1419
      %v1510 = vpop.f32.mrf.mxu0
      %v1511 = vadd.f32 %v1397, %v1510
      %v1512 = vpop.f32.mrf.mxu0
      %v1513 = vpop.f32.mrf.mxu0
      %v1514 = vadd.f32 %v1397, %v1513
      %v1515 = vpop.f32.mrf.mxu0
      %1516 = vmatprep.mubr.bf16.mxu0 0
      %1517 = vmatmul.mubr.bf16.gmra.mxu0 %v1422
      %v1518 = vpop.f32.mrf.mxu0
      %v1519 = vadd.f32 %v1397, %v1518
      %v1520 = vpop.f32.mrf.mxu0
      %v1521 = vpop.f32.mrf.mxu0
      %v1522 = vadd.f32 %v1397, %v1521
      %v1523 = vpop.f32.mrf.mxu0
      %1524 = vdwg.mxu0
      %vm1525 = vcmp.gt.f32.partialorder %v1463, 0.0
      %vm1526 = vcmp.gt.f32.partialorder %v1466, 0.0
      %vm1527 = vcmp.gt.f32.partialorder %v1471, 0.0
      %vm1528 = vcmp.gt.f32.partialorder %v1474, 0.0
      %vm1529 = vcmp.gt.f32.partialorder %v1479, 0.0
      %vm1530 = vcmp.gt.f32.partialorder %v1482, 0.0
      %vm1531 = vcmp.gt.f32.partialorder %v1487, 0.0
      %vm1532 = vcmp.gt.f32.partialorder %v1490, 0.0
      %vm1533 = vcmp.gt.f32.partialorder %v1495, 0.0
      %vm1534 = vcmp.gt.f32.partialorder %v1498, 0.0
      %vm1535 = vcmp.gt.f32.partialorder %v1503, 0.0
      %vm1536 = vcmp.gt.f32.partialorder %v1506, 0.0
      %vm1537 = vcmp.gt.f32.partialorder %v1511, 0.0
      %vm1538 = vcmp.gt.f32.partialorder %v1514, 0.0
      %vm1539 = vcmp.gt.f32.partialorder %v1519, 0.0
      %vm1540 = vcmp.gt.f32.partialorder %v1522, 0.0
      %v1541 = vmul.f32 %v1463, 0.01
      %v1542 = vmul.f32 %v1466, 0.01
      %v1543 = vmul.f32 %v1471, 0.01
      %v1544 = vmul.f32 %v1474, 0.01
      %v1545 = vmul.f32 %v1479, 0.01
      %v1546 = vmul.f32 %v1482, 0.01
      %v1547 = vmul.f32 %v1487, 0.01
      %v1548 = vmul.f32 %v1490, 0.01
      %v1549 = vmul.f32 %v1495, 0.01
      %v1550 = vmul.f32 %v1498, 0.01
      %v1551 = vmul.f32 %v1503, 0.01
      %v1552 = vmul.f32 %v1506, 0.01
      %v1553 = vmul.f32 %v1511, 0.01
      %v1554 = vmul.f32 %v1514, 0.01
      %v1555 = vmul.f32 %v1519, 0.01
      %v1556 = vmul.f32 %v1522, 0.01
      %v1557 = vsel %vm1525, %v1463, %v1541
      %v1558 = vsel %vm1526, %v1466, %v1542
      %v1559 = vsel %vm1527, %v1471, %v1543
      %v1560 = vsel %vm1528, %v1474, %v1544
      %v1561 = vsel %vm1529, %v1479, %v1545
      %v1562 = vsel %vm1530, %v1482, %v1546
      %v1563 = vsel %vm1531, %v1487, %v1547
      %v1564 = vsel %vm1532, %v1490, %v1548
      %v1565 = vsel %vm1533, %v1495, %v1549
      %v1566 = vsel %vm1534, %v1498, %v1550
      %v1567 = vsel %vm1535, %v1503, %v1551
      %v1568 = vsel %vm1536, %v1506, %v1552
      %v1569 = vsel %vm1537, %v1511, %v1553
      %v1570 = vsel %vm1538, %v1514, %v1554
      %v1571 = vsel %vm1539, %v1519, %v1555
      %v1572 = vsel %vm1540, %v1522, %v1556
      %vm1573 = vcmask 130048
      %1574 = vst.msk [vmem:[%s260] sm:$0xff] %vm1573, %v1557
      %1575 = vst.msk [vmem:[%s260 + $0x8] sm:$0xff] %vm1573, %v1558
      %1576 = vst.msk [vmem:[%s260 + $0x10] sm:$0xff] %vm1573, %v1559
      %1577 = vst.msk [vmem:[%s260 + $0x18] sm:$0xff] %vm1573, %v1560
      %1578 = vst.msk [vmem:[%s260 + $0x20] sm:$0xff] %vm1573, %v1561
      %1579 = vst.msk [vmem:[%s260 + $0x28] sm:$0xff] %vm1573, %v1562
      %1580 = vst.msk [vmem:[%s260 + $0x30] sm:$0xff] %vm1573, %v1563
      %1581 = vst.msk [vmem:[%s260 + $0x38] sm:$0xff] %vm1573, %v1564
      %1582 = vst.msk [vmem:[%s260 + $0x40] sm:$0xff] %vm1573, %v1565
      %1583 = vst.msk [vmem:[%s260 + $0x48] sm:$0xff] %vm1573, %v1566
      %1584 = vst.msk [vmem:[%s260 + $0x50] sm:$0xff] %vm1573, %v1567
      %1585 = vst.msk [vmem:[%s260 + $0x58] sm:$0xff] %vm1573, %v1568
      %1586 = vst.msk [vmem:[%s260 + $0x60] sm:$0xff] %vm1573, %v1569
      %1587 = vst.msk [vmem:[%s260 + $0x68] sm:$0xff] %vm1573, %v1570
      %1588 = vst.msk [vmem:[%s260 + $0x70] sm:$0xff] %vm1573, %v1571
      %1589 = vst.msk [vmem:[%s260 + $0x78] sm:$0xff] %vm1573, %v1572
      %p1590 = scmp.lt.s32.totalorder %s20, 1
      %s1591 = scalar_select %p1590, %s20, 1
      %p1592 = scmp.lt.s32.totalorder %s21, 1
      %s1593 = scalar_select %p1592, %s21, 1
      %s1594 = smul.addr %s1593, 16
      %s1595 = smul.addr %s1591, 32
      %s1596 = sadd.s32 %s1594, %s1595
      %s1597 = smul.addr %s1596, 8
      %s1598 = scalar_lea.vmem %s5, %s1597
      // Predicated region
      $region41: #{conv_dw_pallas.1} parent=39 // pred_check
        %p1599 = pneg %p160
      $region42: #{conv_dw_pallas.1} parent=39 // pred_check_branch
        %1601 = sbr.rel (%p1599) target = $region44
      $region43: #{conv_dw_pallas.1} parent=39 // pred_region
        _
      $region44: #{conv_dw_pallas.1} parent=39 // pred_fallthru
        _
    $region40: #{conv_dw_pallas.1} parent=5 // pred_fallthru
      _
    %p1602 = scmp.le.s32.totalorder 2, %s11
    // Predicated region
    $region45: #{conv_dw_pallas.1} parent=5 // pred_check
      %p1603 = pneg %p1602
    $region46: #{conv_dw_pallas.1} parent=5 // pred_check_branch
      %1605 = sbr.rel (%p1603) target = $region48
    $region47: #{conv_dw_pallas.1} parent=5 // pred_region
      %s1606 = ssub.s32 %s11, 2
      // Predicated region
      $region49: #{conv_dw_pallas.1} parent=47 // pred_check
        %p1607 = pneg %p166
      $region50: #{conv_dw_pallas.1} parent=47 // pred_check_branch
        %1609 = sbr.rel (%p1607) target = $region52
      $region51: #{conv_dw_pallas.1} parent=47 // pred_region
        %p1610 = scmp.lt.s32.totalorder %s22, 1
        %s1611 = scalar_select %p1610, %s22, 1
        %p1612 = scmp.lt.s32.totalorder %s23, 1
        %s1613 = scalar_select %p1612, %s23, 1
        %s1614 = smul.addr %s1613, 16
        %s1615 = smul.addr %s1611, 32
        %s1616 = sadd.s32 %s1614, %s1615
        %s1617 = smul.addr %s1616, 8
        %s1618 = scalar_lea.vmem %s5, %s1617
      $region52: #{conv_dw_pallas.1} parent=47 // pred_fallthru
        _
    $region48: #{conv_dw_pallas.1} parent=5 // pred_fallthru
      _
  $region6: #{conv_dw_pallas.1} parent=0 // loop_footer
    %s15 = sadd.s32 1, %s11
  $region7: #{conv_dw_pallas.1} parent=0 // loop_footer_branch
    %10 = sbr.rel target = $region3
  $region8: #{conv_dw_pallas.1} parent=0 // loop_exit
    _

</llo_original>
